<compile_context>
chip_gen: v7x
topology: tpu7x:2x2x1
jax: 0.10.0
libtpu: 0.0.40
codegen_flags: <defaults>
</compile_context>

<pallas_src>
import functools
import math

import jax
import jax.numpy as jnp
from jax.experimental import pallas as pl
from jax.experimental.pallas import tpu as pltpu

_EPS = 1e-4          # PixelNorm eps (module passes eps=1e-4 to F.normalize)
_LANE = 128


def _round_up(x, m):
    return ((x + m - 1) // m) * m


def _vmem_capacity_bytes():
    # Per-core VMEM (v5e/v6e: 128 MiB, v7x: 64 MiB); conservative fallback.
    try:
        return int(pltpu.get_tpu_info().vmem_capacity_bytes)
    except Exception:
        return 64 * 1024 * 1024


def _derive_tiling(N, cip, cop, max_tile):
    """Pick sequence-tile rows T per grid step from the per-chip VMEM budget."""
    n8 = _round_up(N, 8)
    cap = _vmem_capacity_bytes()
    vmem_limit = min((cap * 3) // 4, 100 * 1024 * 1024)   # 48 MiB v7x, 96 MiB v5e/v6e
    if max_tile is not None:
        T = max(8, (min(int(max_tile), n8) // 8) * 8)
    else:
        budget = (cap * 3) // 8                           # streaming working set
        # bf16 conv weights, double-buffered by the pipeline.
        wbytes = 2 * 2 * (3 * cip * cop + 3 * cop * cop)
        # rough live bytes / sequence row in pass 1: bf16 x in (x2 buffers),
        # bf16 h out (x2), shifted-slice copies (~3x cip bf16), f32 temps (~4x cop).
        per_row = 4 * cip + 4 * cop + 6 * cip + 16 * cop
        T = (budget - wbytes) // max(per_row, 1)
        T = int(max(256, min(2048, T)))
        T = (T // 8) * 8
        T = min(T, n8)
    NT = -(-N // T)
    n_pad = NT * T
    return T, NT, n_pad, vmem_limit


# ----------------------------------------------------------------------------
# Core forward on (B, N, C) activations.
# ----------------------------------------------------------------------------
def _resnet_block_nlc(x_bnc, params, max_tile=None):
    B, N, Cin = x_bnc.shape
    Cout = params["w1"].shape[-1]
    Cinner = params["se_w1"].shape[-1]

    cip = _round_up(Cin, _LANE)       # padded in-channels
    cop = _round_up(Cout, _LANE)      # padded out-channels
    cnp = _round_up(Cinner, _LANE)    # padded SE inner dim

    T, NT, n_pad, vmem_limit = _derive_tiling(N, cip, cop, max_tile)
    H = 16 if (T % 16 == 0) else 8    # halo rows (16 aligns bf16 sublane packing)

    sqrt_cout = float(math.sqrt(Cout))
    inv_n = 1.0 / float(N)

    # ---- pad / reshape / cast parameters (zero padding is exact) -----------
    xb = jnp.pad(x_bnc.astype(jnp.bfloat16),
                 ((0, 0), (0, n_pad - N), (0, cip - Cin)))

    def pad2(w, r, c):
        return jnp.pad(w, ((0, r - w.shape[0]), (0, c - w.shape[1])))

    # conv taps kept as (3, ci_pad, co_pad): one (C, C) slab per tap.
    w1 = jnp.pad(params["w1"],
                 ((0, 0), (0, cip - Cin), (0, cop - Cout))).astype(jnp.bfloat16)
    w2 = jnp.pad(params["w2"],
                 ((0, 0), (0, cop - Cout), (0, cop - Cout))).astype(jnp.bfloat16)
    wr = pad2(params["wr"], cip, cop).astype(jnp.bfloat16)
    se_w1 = pad2(params["se_w1"], cop, cnp).astype(jnp.bfloat16)
    se_w2 = pad2(params["se_w2"], cnp, cop).astype(jnp.bfloat16)

    b1 = pad2(params["b1"], 1, cop).astype(jnp.float32)
    b2 = pad2(params["b2"], 1, cop).astype(jnp.float32)
    br = pad2(params["br"], 1, cop).astype(jnp.float32)
    se_b1 = pad2(params["se_b1"], 1, cnp).astype(jnp.float32)
    se_b2 = pad2(params["se_b2"], 1, cop).astype(jnp.float32)

    exact = (n_pad == N) and (cop == Cout)
    out_struct = jax.ShapeDtypeStruct((B, n_pad, cop), jnp.float32)

    # ---- shared in-kernel helpers ------------------------------------------
    def pixelnorm_silu(h):
        # F.normalize(dim=channel, eps) * sqrt(C), then SiLU.  rsqrt -> EUP.
        ss = jnp.sum(h * h, axis=-1, keepdims=True)
        h = h * (jax.lax.rsqrt(jnp.maximum(ss, _EPS * _EPS)) * sqrt_cout)
        return h * jax.nn.sigmoid(h)

    def conv3(src, base, w_ref, b_ref, rows):
        # 3-tap conv as 3 accumulated MXU matmuls over row-shifted slices
        # (no lane-concat im2col).  Output row k uses src rows base+k .. base+k+2.
        y = jnp.dot(src[base:base + rows], w_ref[0],
                    preferred_element_type=jnp.float32)
        y = y + jnp.dot(src[base + 1:base + 1 + rows], w_ref[1],
                        preferred_element_type=jnp.float32)
        y = y + jnp.dot(src[base + 2:base + 2 + rows], w_ref[2],
                        preferred_element_type=jnp.float32)
        return y + b_ref[...]

    # =========================================================================
    # Path A: fused single pass (whole sequence in one tile per batch).
    # =========================================================================
    if NT == 1:
        def fused_kernel(x_ref, w1_ref, b1_ref, w2_ref, b2_ref,
                         sw1_ref, sb1_ref, sw2_ref, sb2_ref, wr_ref, br_ref,
                         out_ref):
            x = x_ref[0]                                        # (n_pad, cip) bf16
            zx = jnp.zeros((8, cip), jnp.bfloat16)
            xe = jnp.concatenate([zx, x, zx], axis=0)           # zero 'same' padding
            h1 = pixelnorm_silu(conv3(xe, 7, w1_ref, b1_ref, n_pad))
            if n_pad != N:
                rows = jax.lax.broadcasted_iota(jnp.int32, (n_pad, 1), 0)
                valid = rows < N
                h1 = jnp.where(valid, h1, 0.0)                  # kill bias junk in tail
            h1b = h1.astype(jnp.bfloat16)

            zh = jnp.zeros((8, cop), jnp.bfloat16)
            he = jnp.concatenate([zh, h1b, zh], axis=0)
            h2 = pixelnorm_silu(conv3(he, 7, w2_ref, b2_ref, n_pad))
            if n_pad != N:
                h2 = jnp.where(valid, h2, 0.0)                  # keep SE mean exact

            # SqueezeExcite gate from the per-channel mean over the true N rows.
            avg = jnp.sum(h2, axis=0, keepdims=True) * inv_n    # (1, cop) f32
            g = jnp.dot(avg.astype(jnp.bfloat16), sw1_ref[...],
                        preferred_element_type=jnp.float32) + sb1_ref[...]
            g = g * jax.nn.sigmoid(g)                           # SiLU
            g = jnp.dot(g.astype(jnp.bfloat16), sw2_ref[...],
                        preferred_element_type=jnp.float32) + sb2_ref[...]
            g = jax.nn.sigmoid(g)                               # (1, cop)

            res = jnp.dot(x, wr_ref[...],
                          preferred_element_type=jnp.float32) + br_ref[...]
            out_ref[0] = (h2 * g + res).astype(out_ref.dtype)

        wspec = lambda shape: pl.BlockSpec(shape, lambda b: (0,) * len(shape))

        out = pl.pallas_call(
            fused_kernel,
            out_shape=out_struct,
            grid_spec=pl.GridSpec(
                grid=(B,),
                in_specs=[
                    pl.BlockSpec((1, n_pad, cip), lambda b: (b, 0, 0)),
                    wspec((3, cip, cop)), wspec((1, cop)),
                    wspec((3, cop, cop)), wspec((1, cop)),
                    wspec((cop, cnp)), wspec((1, cnp)),
                    wspec((cnp, cop)), wspec((1, cop)),
                    wspec((cip, cop)), wspec((1, cop)),
                ],
                out_specs=pl.BlockSpec((1, n_pad, cop), lambda b: (b, 0, 0)),
            ),
            compiler_params=pltpu.CompilerParams(
                dimension_semantics=("parallel",),
                vmem_limit_bytes=vmem_limit,
            ),
        )(xb, w1, b1, w2, b2, se_w1, se_b1, se_w2, se_b2, wr, br)

    # =========================================================================
    # Path B: tiled two-pass (long sequences).
    # =========================================================================
    else:
        TBH = T // H                       # tile size in H-row halo blocks
        NBH = n_pad // H                   # sequence length in H-row blocks

        def pass1_kernel(xp_ref, xc_ref, xn_ref, w1_ref, b1_ref, w2_ref, b2_ref,
                         h_ref, psum_ref):
            i = pl.program_id(1)
            rH = jax.lax.broadcasted_iota(jnp.int32, (H, 1), 0)
            # Halo blocks: zero rows whose nominal sequence position is out of
            # range (covers the clamped index_map copies at both ends).  The
            # centre tile never needs masking (HBM tail rows are already zero).
            xp = xp_ref[0]
            xp = jnp.where(i * T - H + rH >= 0, xp, jnp.zeros_like(xp))
            xn = xn_ref[0]
            xn = jnp.where((i + 1) * T + rH < N, xn, jnp.zeros_like(xn))
            x_ext = jnp.concatenate([xp, xc_ref[0], xn], axis=0)   # (T+2H, cip)

            # conv1 over positions i*T-1 .. i*T+T (T+2 rows: one halo row each
            # side so conv2 sees its true neighbours).
            h1 = pixelnorm_silu(conv3(x_ext, H - 2, w1_ref, b1_ref, T + 2))
            k = jax.lax.broadcasted_iota(jnp.int32, (T + 2, 1), 0)
            pos = i * T + k - 1
            h1 = jnp.where((pos >= 0) & (pos < N), h1, 0.0)         # 'same' zero pad
            h1b = h1.astype(jnp.bfloat16)

            # conv2 on the T centre rows.
            h2 = pixelnorm_silu(conv3(h1b, 0, w2_ref, b2_ref, T))
            if n_pad != N:
                rc = jax.lax.broadcasted_iota(jnp.int32, (T, 1), 0)
                h2 = jnp.where(i * T + rc < N, h2, 0.0)             # keep SE sum exact

            h_ref[0] = h2.astype(h_ref.dtype)
            s = jnp.sum(h2, axis=0, keepdims=True)                  # (1, cop) f32
            psum_ref[0] = jnp.broadcast_to(s, (8, cop))             # per-tile partial sum

        def pass2_kernel(h_ref, x_ref, g_ref, wr_ref, br_ref, out_ref):
            res = jnp.dot(x_ref[0], wr_ref[...],
                          preferred_element_type=jnp.float32) + br_ref[...]
            out_ref[0] = (h_ref[0].astype(jnp.float32) * g_ref[0] + res
                          ).astype(out_ref.dtype)

        wspec = lambda shape: pl.BlockSpec(shape, lambda b, i: (0,) * len(shape))

        h, psum = pl.pallas_call(
            pass1_kernel,
            out_shape=(jax.ShapeDtypeStruct((B, n_pad, cop), jnp.bfloat16),
                       jax.ShapeDtypeStruct((B, NT * 8, cop), jnp.float32)),
            grid_spec=pl.GridSpec(
                grid=(B, NT),
                in_specs=[
                    # H-row halo block before the tile (clamped at the start).
                    pl.BlockSpec((1, H, cip),
                                 lambda b, i: (b, jnp.maximum(i * TBH - 1, 0), 0)),
                    # the tile itself
                    pl.BlockSpec((1, T, cip), lambda b, i: (b, i, 0)),
                    # H-row halo block after the tile (clamped at the end).
                    pl.BlockSpec((1, H, cip),
                                 lambda b, i: (b, jnp.minimum((i + 1) * TBH, NBH - 1), 0)),
                    wspec((3, cip, cop)), wspec((1, cop)),
                    wspec((3, cop, cop)), wspec((1, cop)),
                ],
                out_specs=(
                    pl.BlockSpec((1, T, cop), lambda b, i: (b, i, 0)),
                    pl.BlockSpec((1, 8, cop), lambda b, i: (b, i, 0)),
                ),
            ),
            compiler_params=pltpu.CompilerParams(
                dimension_semantics=("parallel", "parallel"),
                vmem_limit_bytes=vmem_limit,
            ),
        )(xb, xb, xb, w1, b1, w2, b2)

        # SqueezeExcite gate: tiny per-batch matmuls, computed once in XLA
        # (hoisted out of the per-tile loop of pass 2).
        hsum = psum.reshape(B, NT, 8, cop)[:, :, 0, :].sum(axis=1)      # (B, cop)
        g = jnp.dot((hsum * inv_n).astype(jnp.bfloat16), se_w1,
                    preferred_element_type=jnp.float32) + se_b1
        g = g * jax.nn.sigmoid(g)
        g = jnp.dot(g.astype(jnp.bfloat16), se_w2,
                    preferred_element_type=jnp.float32) + se_b2
        gate = jax.nn.sigmoid(g)[:, None, :].astype(jnp.float32)       # (B, 1, cop)

        out = pl.pallas_call(
            pass2_kernel,
            out_shape=out_struct,
            grid_spec=pl.GridSpec(
                grid=(B, NT),
                in_specs=[
                    pl.BlockSpec((1, T, cop), lambda b, i: (b, i, 0)),   # h
                    pl.BlockSpec((1, T, cip), lambda b, i: (b, i, 0)),   # x
                    pl.BlockSpec((1, 1, cop), lambda b, i: (b, 0, 0)),   # SE gate
                    wspec((cip, cop)), wspec((1, cop)),
                ],
                out_specs=pl.BlockSpec((1, T, cop), lambda b, i: (b, i, 0)),
            ),
            compiler_params=pltpu.CompilerParams(
                dimension_semantics=("parallel", "parallel"),
                vmem_limit_bytes=vmem_limit,
            ),
        )(h, xb, gate, wr, br)

    if exact:
        return out
    return out[:, :N, :Cout]


# ----------------------------------------------------------------------------
# Public wrappers.
# ----------------------------------------------------------------------------
@functools.partial(jax.jit, static_argnames=("max_tile",))
def resnet_block_forward_nlc(x_bnc, params, max_tile=None):
    """(B, N, C) in -> (B, N, C_out) out (no boundary transposes)."""
    return _resnet_block_nlc(x_bnc, params, max_tile=max_tile)


@functools.partial(jax.jit, static_argnames=("max_tile",))
def resnet_block_forward(x_ncl, params, max_tile=None):
    """PyTorch NCL layout in / NCL out.

    TODO(synk): the NCL<->NLC transposes cost an extra HBM round trip of the
    activations; callers that already hold (B, N, C) tensors should use
    resnet_block_forward_nlc directly.
    """
    out_bnc = _resnet_block_nlc(jnp.transpose(x_ncl, (0, 2, 1)), params,
                                max_tile=max_tile)
    return jnp.transpose(out_bnc, (0, 2, 1))


# ----------------------------------------------------------------------------
# Pure-JAX reference with the same bf16-operand / f32-accumulate numerics.
# ----------------------------------------------------------------------------
def _ref_forward(x_ncl, params, *, h_bf16_roundtrip=False):
    x = jnp.transpose(x_ncl, (0, 2, 1)).astype(jnp.bfloat16)      # (B, N, Cin)

    def conv3(h_bf, w, b):
        wcat = w.reshape(3 * w.shape[1], w.shape[2]).astype(jnp.bfloat16)
        hp = jnp.pad(h_bf, ((0, 0), (1, 1), (0, 0)))
        cat = jnp.concatenate([hp[:, :-2], hp[:, 1:-1], hp[:, 2:]], axis=-1)
        y = jnp.einsum("bnc,cd->bnd", cat, wcat,
                       preferred_element_type=jnp.float32)
        return y + b

    def pn_silu(h):
        ss = jnp.sum(h * h, axis=-1, keepdims=True)
        h = h * (jax.lax.rsqrt(jnp.maximum(ss, _EPS * _EPS)) * math.sqrt(h.shape[-1]))
        return h * jax.nn.sigmoid(h)

    h1 = pn_silu(conv3(x, params["w1"], params["b1"]))
    h2 = pn_silu(conv3(h1.astype(jnp.bfloat16), params["w2"], params["b2"]))

    avg = jnp.mean(h2, axis=1)                                     # (B, Cout) f32
    g = jnp.dot(avg.astype(jnp.bfloat16), params["se_w1"].astype(jnp.bfloat16),
                preferred_element_type=jnp.float32) + params["se_b1"]
    g = g * jax.nn.sigmoid(g)
    g = jnp.dot(g.astype(jnp.bfloat16), params["se_w2"].astype(jnp.bfloat16),
                preferred_element_type=jnp.float32) + params["se_b2"]
    g = jax.nn.sigmoid(g)

    res = jnp.einsum("bnc,cd->bnd", x, params["wr"].astype(jnp.bfloat16),
                     preferred_element_type=jnp.float32) + params["br"]
    # The tiled kernel round-trips h through bf16 HBM storage; the fused path
    # keeps it in f32.  Model whichever path is being checked.
    h_fin = h2.astype(jnp.bfloat16).astype(jnp.float32) if h_bf16_roundtrip else h2
    out = h_fin * g[:, None, :] + res
    return jnp.transpose(out, (0, 2, 1))


# ----------------------------------------------------------------------------
# Deterministic parameter construction (shapes from ResnetBlock.__init__).
# ----------------------------------------------------------------------------
def make_params(key, dim, dim_out):
    dim_inner = max(dim_out // 4, 16)   # SqueezeExcite(reduction_factor=4, min_dim=16)
    ks = jax.random.split(key, 11)
    s = 0.2
    return {
        # conv1: Conv1d(dim, dim_out, 3) stored as (k, ci, co)
        "w1": s * jax.random.normal(ks[0], (3, dim, dim_out), jnp.float32),
        "b1": s * jax.random.normal(ks[1], (1, dim_out), jnp.float32),
        # conv2: Conv1d(dim_out, dim_out, 3)
        "w2": s * jax.random.normal(ks[2], (3, dim_out, dim_out), jnp.float32),
        "b2": s * jax.random.normal(ks[3], (1, dim_out), jnp.float32),
        # residual_conv: Conv1d(dim, dim_out, 1) stored as (ci, co)
        "wr": s * jax.random.normal(ks[4], (dim, dim_out), jnp.float32),
        "br": s * jax.random.normal(ks[5], (1, dim_out), jnp.float32),
        # SqueezeExcite: Linear(dim_out, dim_inner), Linear(dim_inner, dim_out)
        "se_w1": s * jax.random.normal(ks[6], (dim_out, dim_inner), jnp.float32),
        "se_b1": s * jax.random.normal(ks[7], (1, dim_inner), jnp.float32),
        "se_w2": s * jax.random.normal(ks[8], (dim_inner, dim_out), jnp.float32),
        "se_b2": s * jax.random.normal(ks[9], (1, dim_out), jnp.float32),
    }


if __name__ == "__main__":
    key = jax.random.PRNGKey(0)

    # case 1: original small shapes (fused single-pass path, NT == 1).
    B, dim, dim_out, N = 2, 4, 8, 16
    k_x, k_p, key = jax.random.split(key, 3)
    x = jax.random.normal(k_x, (B, dim, N), jnp.float32)      # PyTorch NCL layout
    params = make_params(k_p, dim, dim_out)

    out = jax.block_until_ready(resnet_block_forward(x, params))
    ref = _ref_forward(x, params)
    assert out.shape == (B, dim_out, N)
    assert jnp.allclose(out, ref, atol=2e-3, rtol=2e-3), (
        f"mismatch vs JAX reference (case 1): max abs diff = {jnp.max(jnp.abs(out - ref))}")

    # case 2: ragged N (exercises sequence padding / masking, still fused).
    B2, dim2, dim_out2, N2 = 1, 8, 12, 20
    k_x2, k_p2, key = jax.random.split(key, 3)
    x2 = jax.random.normal(k_x2, (B2, dim2, N2), jnp.float32)
    params2 = make_params(k_p2, dim2, dim_out2)

    out2 = jax.block_until_ready(resnet_block_forward(x2, params2))
    ref2 = _ref_forward(x2, params2)
    assert out2.shape == (B2, dim_out2, N2)
    assert jnp.allclose(out2, ref2, atol=2e-3, rtol=2e-3), (
        f"mismatch vs JAX reference (case 2): max abs diff = {jnp.max(jnp.abs(out2 - ref2))}")

    # case 3: force a tiny tile to exercise the tiled two-pass path
    # (halo handling, per-tile partial SE sums, hoisted gate, pass 2).
    out3 = jax.block_until_ready(resnet_block_forward(x2, params2, max_tile=8))
    ref3 = _ref_forward(x2, params2, h_bf16_roundtrip=True)
    assert out3.shape == (B2, dim_out2, N2)
    assert jnp.allclose(out3, ref3, atol=2e-3, rtol=2e-3), (
        f"mismatch vs JAX reference (case 3): max abs diff = {jnp.max(jnp.abs(out3 - ref3))}")

    print("KERNEL_OK")
</pallas_src>

<mosaic_0001>
module attributes {stable_mosaic.version = 11 : i64} {
  func.func @fused_kernel(%arg0: i32, %arg1: memref<1x16x128xbf16, #tpu.memory_space<vmem>>, %arg2: memref<3x128x128xbf16, #tpu.memory_space<vmem>>, %arg3: memref<1x128xf32, #tpu.memory_space<vmem>>, %arg4: memref<3x128x128xbf16, #tpu.memory_space<vmem>>, %arg5: memref<1x128xf32, #tpu.memory_space<vmem>>, %arg6: memref<128x128xbf16, #tpu.memory_space<vmem>>, %arg7: memref<1x128xf32, #tpu.memory_space<vmem>>, %arg8: memref<128x128xbf16, #tpu.memory_space<vmem>>, %arg9: memref<1x128xf32, #tpu.memory_space<vmem>>, %arg10: memref<128x128xbf16, #tpu.memory_space<vmem>>, %arg11: memref<1x128xf32, #tpu.memory_space<vmem>>, %arg12: memref<1x16x128xf32, #tpu.memory_space<vmem>>) attributes {dimension_semantics = [#tpu.dimension_semantics<parallel>], iteration_bounds = array<i64: 2>, scalar_prefetch = 0 : i64, scratch_operands = 0 : i64, tpu.core_type = #tpu.core_type<tc>, window_params = [{transform_indices = @transform_0, window_bounds = array<i64: 1, 16, 128>}, {pipeline_mode = #tpu.pipeline_mode<synchronous>, transform_indices = @transform_1, window_bounds = array<i64: 3, 128, 128>}, {pipeline_mode = #tpu.pipeline_mode<synchronous>, transform_indices = @transform_2, window_bounds = array<i64: 1, 128>}, {pipeline_mode = #tpu.pipeline_mode<synchronous>, transform_indices = @transform_3, window_bounds = array<i64: 3, 128, 128>}, {pipeline_mode = #tpu.pipeline_mode<synchronous>, transform_indices = @transform_4, window_bounds = array<i64: 1, 128>}, {pipeline_mode = #tpu.pipeline_mode<synchronous>, transform_indices = @transform_5, window_bounds = array<i64: 128, 128>}, {pipeline_mode = #tpu.pipeline_mode<synchronous>, transform_indices = @transform_6, window_bounds = array<i64: 1, 128>}, {pipeline_mode = #tpu.pipeline_mode<synchronous>, transform_indices = @transform_7, window_bounds = array<i64: 128, 128>}, {pipeline_mode = #tpu.pipeline_mode<synchronous>, transform_indices = @transform_8, window_bounds = array<i64: 1, 128>}, {pipeline_mode = #tpu.pipeline_mode<synchronous>, transform_indices = @transform_9, window_bounds = array<i64: 128, 128>}, {pipeline_mode = #tpu.pipeline_mode<synchronous>, transform_indices = @transform_10, window_bounds = array<i64: 1, 128>}, {transform_indices = @transform_11, window_bounds = array<i64: 1, 16, 128>}]} {
    %c0 = arith.constant 0 : index
    %c0_0 = arith.constant 0 : index
    %c0_1 = arith.constant 0 : index
    %0 = vector.load %arg1[%c0, %c0_0, %c0_1] : memref<1x16x128xbf16, #tpu.memory_space<vmem>>, vector<1x16x128xbf16>
    %1 = vector.shape_cast %0 : vector<1x16x128xbf16> to vector<16x128xbf16>
    %cst = arith.constant 0.000000e+00 : bf16
    %2 = vector.broadcast %cst : bf16 to vector<8x128xbf16>
    %3 = tpu.concatenate %2, %1, %2 in 0 : vector<8x128xbf16>, vector<16x128xbf16>, vector<8x128xbf16> -> vector<32x128xbf16>
    %4 = vector.extract_strided_slice %3 {offsets = [7, 0], sizes = [16, 128], strides = [1, 1]} : vector<32x128xbf16> to vector<16x128xbf16>
    %c0_2 = arith.constant 0 : index
    %c0_3 = arith.constant 0 : index
    %c0_4 = arith.constant 0 : index
    %5 = vector.load %arg2[%c0_2, %c0_3, %c0_4] : memref<3x128x128xbf16, #tpu.memory_space<vmem>>, vector<1x128x128xbf16>
    %6 = vector.shape_cast %5 : vector<1x128x128xbf16> to vector<128x128xbf16>
    %cst_5 = arith.constant dense<0.000000e+00> : vector<16x128xf32>
    %7 = tpu.matmul %4, %6, %cst_5 {dimension_numbers = #tpu.dot_dimension_numbers<[1], [0], [0], [1], [0, 0, 1, 1], [], []>} : vector<16x128xbf16>, vector<128x128xbf16>, vector<16x128xf32> -> vector<16x128xf32>
    %8 = vector.extract_strided_slice %3 {offsets = [8, 0], sizes = [16, 128], strides = [1, 1]} : vector<32x128xbf16> to vector<16x128xbf16>
    %c1 = arith.constant 1 : index
    %c0_6 = arith.constant 0 : index
    %c0_7 = arith.constant 0 : index
    %9 = vector.load %arg2[%c1, %c0_6, %c0_7] : memref<3x128x128xbf16, #tpu.memory_space<vmem>>, vector<1x128x128xbf16>
    %10 = vector.shape_cast %9 : vector<1x128x128xbf16> to vector<128x128xbf16>
    %cst_8 = arith.constant dense<0.000000e+00> : vector<16x128xf32>
    %11 = tpu.matmul %8, %10, %cst_8 {dimension_numbers = #tpu.dot_dimension_numbers<[1], [0], [0], [1], [0, 0, 1, 1], [], []>} : vector<16x128xbf16>, vector<128x128xbf16>, vector<16x128xf32> -> vector<16x128xf32>
    %12 = arith.addf %7, %11 : vector<16x128xf32>
    %13 = vector.extract_strided_slice %3 {offsets = [9, 0], sizes = [16, 128], strides = [1, 1]} : vector<32x128xbf16> to vector<16x128xbf16>
    %c2 = arith.constant 2 : index
    %c0_9 = arith.constant 0 : index
    %c0_10 = arith.constant 0 : index
    %14 = vector.load %arg2[%c2, %c0_9, %c0_10] : memref<3x128x128xbf16, #tpu.memory_space<vmem>>, vector<1x128x128xbf16>
    %15 = vector.shape_cast %14 : vector<1x128x128xbf16> to vector<128x128xbf16>
    %cst_11 = arith.constant dense<0.000000e+00> : vector<16x128xf32>
    %16 = tpu.matmul %13, %15, %cst_11 {dimension_numbers = #tpu.dot_dimension_numbers<[1], [0], [0], [1], [0, 0, 1, 1], [], []>} : vector<16x128xbf16>, vector<128x128xbf16>, vector<16x128xf32> -> vector<16x128xf32>
    %17 = arith.addf %12, %16 : vector<16x128xf32>
    %c0_12 = arith.constant 0 : index
    %c0_13 = arith.constant 0 : index
    %18 = vector.load %arg3[%c0_12, %c0_13] : memref<1x128xf32, #tpu.memory_space<vmem>>, vector<1x128xf32>
    %19 = vector.broadcast %18 : vector<1x128xf32> to vector<16x128xf32>
    %20 = arith.addf %17, %19 : vector<16x128xf32>
    %21 = arith.mulf %20, %20 : vector<16x128xf32>
    %cst_14 = arith.constant dense<0.000000e+00> : vector<16xf32>
    %22 = vector.multi_reduction <add>, %21, %cst_14 [1] : vector<16x128xf32> to vector<16xf32>
    %23 = vector.shape_cast %22 : vector<16xf32> to vector<16x1xf32>
    %cst_15 = arith.constant 9.99999993E-9 : f32
    %24 = vector.broadcast %cst_15 : f32 to vector<16x1xf32>
    %25 = arith.maximumf %23, %24 : vector<16x1xf32>
    %26 = math.rsqrt %25 : vector<16x1xf32>
    %cst_16 = arith.constant 2.82842708 : f32
    %27 = vector.broadcast %cst_16 : f32 to vector<16x1xf32>
    %28 = arith.mulf %26, %27 : vector<16x1xf32>
    %29 = vector.broadcast %28 : vector<16x1xf32> to vector<16x128xf32>
    %30 = arith.mulf %20, %29 : vector<16x128xf32>
    %31 = arith.negf %30 : vector<16x128xf32>
    %32 = math.exp %31 : vector<16x128xf32>
    %cst_17 = arith.constant 1.000000e+00 : f32
    %33 = vector.broadcast %cst_17 : f32 to vector<16x128xf32>
    %34 = arith.addf %33, %32 : vector<16x128xf32>
    %35 = arith.divf %33, %34 : vector<16x128xf32>
    %36 = arith.mulf %30, %35 : vector<16x128xf32>
    %37 = arith.truncf %36 : vector<16x128xf32> to vector<16x128xbf16>
    %cst_18 = arith.constant 0.000000e+00 : bf16
    %38 = vector.broadcast %cst_18 : bf16 to vector<8x128xbf16>
    %39 = tpu.concatenate %38, %37, %38 in 0 : vector<8x128xbf16>, vector<16x128xbf16>, vector<8x128xbf16> -> vector<32x128xbf16>
    %40 = vector.extract_strided_slice %39 {offsets = [7, 0], sizes = [16, 128], strides = [1, 1]} : vector<32x128xbf16> to vector<16x128xbf16>
    %c0_19 = arith.constant 0 : index
    %c0_20 = arith.constant 0 : index
    %c0_21 = arith.constant 0 : index
    %41 = vector.load %arg4[%c0_19, %c0_20, %c0_21] : memref<3x128x128xbf16, #tpu.memory_space<vmem>>, vector<1x128x128xbf16>
    %42 = vector.shape_cast %41 : vector<1x128x128xbf16> to vector<128x128xbf16>
    %cst_22 = arith.constant dense<0.000000e+00> : vector<16x128xf32>
    %43 = tpu.matmul %40, %42, %cst_22 {dimension_numbers = #tpu.dot_dimension_numbers<[1], [0], [0], [1], [0, 0, 1, 1], [], []>} : vector<16x128xbf16>, vector<128x128xbf16>, vector<16x128xf32> -> vector<16x128xf32>
    %44 = vector.extract_strided_slice %39 {offsets = [8, 0], sizes = [16, 128], strides = [1, 1]} : vector<32x128xbf16> to vector<16x128xbf16>
    %c1_23 = arith.constant 1 : index
    %c0_24 = arith.constant 0 : index
    %c0_25 = arith.constant 0 : index
    %45 = vector.load %arg4[%c1_23, %c0_24, %c0_25] : memref<3x128x128xbf16, #tpu.memory_space<vmem>>, vector<1x128x128xbf16>
    %46 = vector.shape_cast %45 : vector<1x128x128xbf16> to vector<128x128xbf16>
    %cst_26 = arith.constant dense<0.000000e+00> : vector<16x128xf32>
    %47 = tpu.matmul %44, %46, %cst_26 {dimension_numbers = #tpu.dot_dimension_numbers<[1], [0], [0], [1], [0, 0, 1, 1], [], []>} : vector<16x128xbf16>, vector<128x128xbf16>, vector<16x128xf32> -> vector<16x128xf32>
    %48 = arith.addf %43, %47 : vector<16x128xf32>
    %49 = vector.extract_strided_slice %39 {offsets = [9, 0], sizes = [16, 128], strides = [1, 1]} : vector<32x128xbf16> to vector<16x128xbf16>
    %c2_27 = arith.constant 2 : index
    %c0_28 = arith.constant 0 : index
    %c0_29 = arith.constant 0 : index
    %50 = vector.load %arg4[%c2_27, %c0_28, %c0_29] : memref<3x128x128xbf16, #tpu.memory_space<vmem>>, vector<1x128x128xbf16>
    %51 = vector.shape_cast %50 : vector<1x128x128xbf16> to vector<128x128xbf16>
    %cst_30 = arith.constant dense<0.000000e+00> : vector<16x128xf32>
    %52 = tpu.matmul %49, %51, %cst_30 {dimension_numbers = #tpu.dot_dimension_numbers<[1], [0], [0], [1], [0, 0, 1, 1], [], []>} : vector<16x128xbf16>, vector<128x128xbf16>, vector<16x128xf32> -> vector<16x128xf32>
    %53 = arith.addf %48, %52 : vector<16x128xf32>
    %c0_31 = arith.constant 0 : index
    %c0_32 = arith.constant 0 : index
    %54 = vector.load %arg5[%c0_31, %c0_32] : memref<1x128xf32, #tpu.memory_space<vmem>>, vector<1x128xf32>
    %55 = vector.broadcast %54 : vector<1x128xf32> to vector<16x128xf32>
    %56 = arith.addf %53, %55 : vector<16x128xf32>
    %57 = arith.mulf %56, %56 : vector<16x128xf32>
    %cst_33 = arith.constant dense<0.000000e+00> : vector<16xf32>
    %58 = vector.multi_reduction <add>, %57, %cst_33 [1] : vector<16x128xf32> to vector<16xf32>
    %59 = vector.shape_cast %58 : vector<16xf32> to vector<16x1xf32>
    %cst_34 = arith.constant 9.99999993E-9 : f32
    %60 = vector.broadcast %cst_34 : f32 to vector<16x1xf32>
    %61 = arith.maximumf %59, %60 : vector<16x1xf32>
    %62 = math.rsqrt %61 : vector<16x1xf32>
    %cst_35 = arith.constant 2.82842708 : f32
    %63 = vector.broadcast %cst_35 : f32 to vector<16x1xf32>
    %64 = arith.mulf %62, %63 : vector<16x1xf32>
    %65 = vector.broadcast %64 : vector<16x1xf32> to vector<16x128xf32>
    %66 = arith.mulf %56, %65 : vector<16x128xf32>
    %67 = arith.negf %66 : vector<16x128xf32>
    %68 = math.exp %67 : vector<16x128xf32>
    %cst_36 = arith.constant 1.000000e+00 : f32
    %69 = vector.broadcast %cst_36 : f32 to vector<16x128xf32>
    %70 = arith.addf %69, %68 : vector<16x128xf32>
    %71 = arith.divf %69, %70 : vector<16x128xf32>
    %72 = arith.mulf %66, %71 : vector<16x128xf32>
    %cst_37 = arith.constant dense<0.000000e+00> : vector<128xf32>
    %73 = vector.multi_reduction <add>, %72, %cst_37 [0] : vector<16x128xf32> to vector<128xf32>
    %74 = vector.shape_cast %73 : vector<128xf32> to vector<1x128xf32>
    %cst_38 = arith.constant 6.250000e-02 : f32
    %75 = vector.broadcast %cst_38 : f32 to vector<1x128xf32>
    %76 = arith.mulf %74, %75 : vector<1x128xf32>
    %77 = arith.truncf %76 : vector<1x128xf32> to vector<1x128xbf16>
    %c0_39 = arith.constant 0 : index
    %c0_40 = arith.constant 0 : index
    %78 = vector.load %arg6[%c0_39, %c0_40] : memref<128x128xbf16, #tpu.memory_space<vmem>>, vector<128x128xbf16>
    %cst_41 = arith.constant dense<0.000000e+00> : vector<1x128xf32>
    %79 = tpu.matmul %77, %78, %cst_41 {dimension_numbers = #tpu.dot_dimension_numbers<[1], [0], [0], [1], [0, 0, 1, 1], [], []>} : vector<1x128xbf16>, vector<128x128xbf16>, vector<1x128xf32> -> vector<1x128xf32>
    %c0_42 = arith.constant 0 : index
    %c0_43 = arith.constant 0 : index
    %80 = vector.load %arg7[%c0_42, %c0_43] : memref<1x128xf32, #tpu.memory_space<vmem>>, vector<1x128xf32>
    %81 = arith.addf %79, %80 : vector<1x128xf32>
    %82 = arith.negf %81 : vector<1x128xf32>
    %83 = math.exp %82 : vector<1x128xf32>
    %cst_44 = arith.constant 1.000000e+00 : f32
    %84 = vector.broadcast %cst_44 : f32 to vector<1x128xf32>
    %85 = arith.addf %84, %83 : vector<1x128xf32>
    %86 = arith.divf %84, %85 : vector<1x128xf32>
    %87 = arith.mulf %81, %86 : vector<1x128xf32>
    %88 = arith.truncf %87 : vector<1x128xf32> to vector<1x128xbf16>
    %c0_45 = arith.constant 0 : index
    %c0_46 = arith.constant 0 : index
    %89 = vector.load %arg8[%c0_45, %c0_46] : memref<128x128xbf16, #tpu.memory_space<vmem>>, vector<128x128xbf16>
    %cst_47 = arith.constant dense<0.000000e+00> : vector<1x128xf32>
    %90 = tpu.matmul %88, %89, %cst_47 {dimension_numbers = #tpu.dot_dimension_numbers<[1], [0], [0], [1], [0, 0, 1, 1], [], []>} : vector<1x128xbf16>, vector<128x128xbf16>, vector<1x128xf32> -> vector<1x128xf32>
    %c0_48 = arith.constant 0 : index
    %c0_49 = arith.constant 0 : index
    %91 = vector.load %arg9[%c0_48, %c0_49] : memref<1x128xf32, #tpu.memory_space<vmem>>, vector<1x128xf32>
    %92 = arith.addf %90, %91 : vector<1x128xf32>
    %93 = arith.negf %92 : vector<1x128xf32>
    %94 = math.exp %93 : vector<1x128xf32>
    %cst_50 = arith.constant 1.000000e+00 : f32
    %95 = vector.broadcast %cst_50 : f32 to vector<1x128xf32>
    %96 = arith.addf %95, %94 : vector<1x128xf32>
    %97 = arith.divf %95, %96 : vector<1x128xf32>
    %c0_51 = arith.constant 0 : index
    %c0_52 = arith.constant 0 : index
    %98 = vector.load %arg10[%c0_51, %c0_52] : memref<128x128xbf16, #tpu.memory_space<vmem>>, vector<128x128xbf16>
    %cst_53 = arith.constant dense<0.000000e+00> : vector<16x128xf32>
    %99 = tpu.matmul %1, %98, %cst_53 {dimension_numbers = #tpu.dot_dimension_numbers<[1], [0], [0], [1], [0, 0, 1, 1], [], []>} : vector<16x128xbf16>, vector<128x128xbf16>, vector<16x128xf32> -> vector<16x128xf32>
    %c0_54 = arith.constant 0 : index
    %c0_55 = arith.constant 0 : index
    %100 = vector.load %arg11[%c0_54, %c0_55] : memref<1x128xf32, #tpu.memory_space<vmem>>, vector<1x128xf32>
    %101 = vector.broadcast %100 : vector<1x128xf32> to vector<16x128xf32>
    %102 = arith.addf %99, %101 : vector<16x128xf32>
    %103 = vector.broadcast %97 : vector<1x128xf32> to vector<16x128xf32>
    %104 = arith.mulf %72, %103 : vector<16x128xf32>
    %105 = arith.addf %104, %102 : vector<16x128xf32>
    %c0_56 = arith.constant 0 : index
    %c0_57 = arith.constant 0 : index
    %c0_58 = arith.constant 0 : index
    %106 = vector.load %arg12[%c0_56, %c0_57, %c0_58] : memref<1x16x128xf32, #tpu.memory_space<vmem>>, vector<1x16x128xf32>
    %107 = vector.shape_cast %106 : vector<1x16x128xf32> to vector<16x128xf32>
    %108 = vector.shape_cast %105 : vector<16x128xf32> to vector<1x16x128xf32>
    tpu.vector_store %arg12[%c0_56, %c0_57, %c0_58], %108 {strides = array<i32>} : memref<1x16x128xf32, #tpu.memory_space<vmem>>, vector<1x16x128xf32>,
    return
  }
  func.func @transform_0(%arg0: i32) -> (i32, i32, i32) {
    %c0_i32 = arith.constant 0 : i32
    %c0_i32_0 = arith.constant 0 : i32
    %c0_i32_1 = arith.constant 0 : i32
    return %arg0, %c0_i32, %c0_i32_0 : i32, i32, i32
  }
  func.func @transform_1(%arg0: i32) -> (i32, i32, i32) {
    %c0_i32 = arith.constant 0 : i32
    %c0_i32_0 = arith.constant 0 : i32
    %c0_i32_1 = arith.constant 0 : i32
    %c0_i32_2 = arith.constant 0 : i32
    return %c0_i32, %c0_i32_0, %c0_i32_1 : i32, i32, i32
  }
  func.func @transform_2(%arg0: i32) -> (i32, i32) {
    %c0_i32 = arith.constant 0 : i32
    %c0_i32_0 = arith.constant 0 : i32
    %c0_i32_1 = arith.constant 0 : i32
    return %c0_i32, %c0_i32_0 : i32, i32
  }
  func.func @transform_3(%arg0: i32) -> (i32, i32, i32) {
    %c0_i32 = arith.constant 0 : i32
    %c0_i32_0 = arith.constant 0 : i32
    %c0_i32_1 = arith.constant 0 : i32
    %c0_i32_2 = arith.constant 0 : i32
    return %c0_i32, %c0_i32_0, %c0_i32_1 : i32, i32, i32
  }
  func.func @transform_4(%arg0: i32) -> (i32, i32) {
    %c0_i32 = arith.constant 0 : i32
    %c0_i32_0 = arith.constant 0 : i32
    %c0_i32_1 = arith.constant 0 : i32
    return %c0_i32, %c0_i32_0 : i32, i32
  }
  func.func @transform_5(%arg0: i32) -> (i32, i32) {
    %c0_i32 = arith.constant 0 : i32
    %c0_i32_0 = arith.constant 0 : i32
    %c0_i32_1 = arith.constant 0 : i32
    return %c0_i32, %c0_i32_0 : i32, i32
  }
  func.func @transform_6(%arg0: i32) -> (i32, i32) {
    %c0_i32 = arith.constant 0 : i32
    %c0_i32_0 = arith.constant 0 : i32
    %c0_i32_1 = arith.constant 0 : i32
    return %c0_i32, %c0_i32_0 : i32, i32
  }
  func.func @transform_7(%arg0: i32) -> (i32, i32) {
    %c0_i32 = arith.constant 0 : i32
    %c0_i32_0 = arith.constant 0 : i32
    %c0_i32_1 = arith.constant 0 : i32
    return %c0_i32, %c0_i32_0 : i32, i32
  }
  func.func @transform_8(%arg0: i32) -> (i32, i32) {
    %c0_i32 = arith.constant 0 : i32
    %c0_i32_0 = arith.constant 0 : i32
    %c0_i32_1 = arith.constant 0 : i32
    return %c0_i32, %c0_i32_0 : i32, i32
  }
  func.func @transform_9(%arg0: i32) -> (i32, i32) {
    %c0_i32 = arith.constant 0 : i32
    %c0_i32_0 = arith.constant 0 : i32
    %c0_i32_1 = arith.constant 0 : i32
    return %c0_i32, %c0_i32_0 : i32, i32
  }
  func.func @transform_10(%arg0: i32) -> (i32, i32) {
    %c0_i32 = arith.constant 0 : i32
    %c0_i32_0 = arith.constant 0 : i32
    %c0_i32_1 = arith.constant 0 : i32
    return %c0_i32, %c0_i32_0 : i32, i32
  }
  func.func @transform_11(%arg0: i32) -> (i32, i32, i32) {
    %c0_i32 = arith.constant 0 : i32
    %c0_i32_0 = arith.constant 0 : i32
    %c0_i32_1 = arith.constant 0 : i32
    return %arg0, %c0_i32, %c0_i32_0 : i32, i32, i32
  }
}

</mosaic_0001>

<llo_original>
// kernel: resnet_block_forward.1
$region0: #{resnet_block_forward.1}
  #allocation0 [shape = 'u32[]', space=smem, size = 0x4, offset = 0x4, fixed_abs, tag = 'smem constant byte address 0x4 - core index']
  #allocation1 [shape = 'u32[144,128]{1,0:T(1,128)}', space=vmem, size = 0x12000, scoped, tag = 'internal scratch']
  %s0 = inlined_call_operand.vmem [shape: bf16[2,16,128], index: 0, kind: input, shape index: {}]
  %s1 = inlined_call_operand.vmem [shape: bf16[3,128,128], index: 1, kind: input, shape index: {}]
  %s2 = inlined_call_operand.vmem [shape: f32[1,128], index: 2, kind: input, shape index: {}]
  %s3 = inlined_call_operand.vmem [shape: bf16[3,128,128], index: 3, kind: input, shape index: {}]
  %s4 = inlined_call_operand.vmem [shape: f32[1,128], index: 4, kind: input, shape index: {}]
  %s5 = inlined_call_operand.vmem [shape: bf16[128,128], index: 5, kind: input, shape index: {}]
  %s6 = inlined_call_operand.vmem [shape: f32[1,128], index: 6, kind: input, shape index: {}]
  %s7 = inlined_call_operand.vmem [shape: bf16[128,128], index: 7, kind: input, shape index: {}]
  %s8 = inlined_call_operand.vmem [shape: f32[1,128], index: 8, kind: input, shape index: {}]
  %s9 = inlined_call_operand.vmem [shape: bf16[128,128], index: 9, kind: input, shape index: {}]
  %s10 = inlined_call_operand.vmem [shape: f32[1,128], index: 10, kind: input, shape index: {}]
  %s11 = inlined_call_operand.vmem [shape: f32[2,16,128], index: 11, kind: output, shape index: {}]
  %s12 = sld [smem:[#allocation0]]
  $region77: #{resnet_block_forward.1} parent=0
    _
  %s14 = ssub.s32 1, %s12
  %s15 = scalar_select 0, %s14, %s12
  loop: start=0, step=1, limit=4
  $region2: #{resnet_block_forward.1} parent=0 // loop_pre_header
    _
  $region3: #{resnet_block_forward.1} parent=0 // loop_header
    %s17 = sphi 0, %s21
    %p18 = scmp.ge.s32.totalorder %s17, 4
    %s27 = sphi 0, %s29
    %s30 = sphi 0, %s27
    %s31 = sphi 0, %s30
    %s47 = sphi 0, %s31
    %s51 = sphi 0, %s51
    %s53 = sphi 0, %s51
    %s54 = sphi 0, %s53
    %s68 = sphi 0, %s54
    %s72 = sphi 0, %s72
    %s74 = sphi 0, %s72
    %s75 = sphi 0, %s74
    %s89 = sphi 0, %s75
    %s93 = sphi 0, %s93
    %s95 = sphi 0, %s93
    %s96 = sphi 0, %s95
    %s110 = sphi 0, %s96
    %s114 = sphi 0, %s114
    %s116 = sphi 0, %s114
    %s117 = sphi 0, %s116
    %s131 = sphi 0, %s117
    %s135 = sphi 0, %s135
    %s137 = sphi 0, %s135
    %s138 = sphi 0, %s137
    %s152 = sphi 0, %s138
    %s156 = sphi 0, %s156
    %s158 = sphi 0, %s156
    %s159 = sphi 0, %s158
    %s173 = sphi 0, %s159
    %s177 = sphi 0, %s177
    %s179 = sphi 0, %s177
    %s180 = sphi 0, %s179
    %s194 = sphi 0, %s180
    %s198 = sphi 0, %s198
    %s200 = sphi 0, %s198
    %s201 = sphi 0, %s200
    %s215 = sphi 0, %s201
    %s219 = sphi 0, %s219
    %s221 = sphi 0, %s219
    %s222 = sphi 0, %s221
    %s236 = sphi 0, %s222
    %s240 = sphi 0, %s240
    %s242 = sphi 0, %s240
    %s243 = sphi 0, %s242
    %s257 = sphi 0, %s243
    %s263 = sphi 0, %s265
    %s266 = sphi 0, %s263
    %s267 = sphi 0, %s266
    %s283 = sphi 0, %s267
  $region4: #{resnet_block_forward.1} parent=0 // loop_header_branch
    %20 = sbr.rel (%p18) target = $region8
  $region5: #{resnet_block_forward.1} parent=0 // loop_body
    %s22 = ssub.s32 %s17, 1
    %s23 = ssub.s32 %s17, 2
    %s24 = sadd.s32 %s17, 1
    %s25 = ssub.s32 %s17, %s24
    %p26 = scmp.eq.s32.totalorder %s25, 0
    %s28 = sadd.s32 %s27, 1
    %s29 = scalar_select %p26, %s27, %s28
    %p32 = pneg %p26
    %p33 = scmp.eq.s32.totalorder %s17, 1
    %p34 = por %p32, %p33
    %p35 = scmp.ne.s32.totalorder %s27, %s30
    %p36 = scmp.eq.s32.totalorder %s17, 0
    %p37 = por %p35, %p36
    %p38 = scmp.ne.s32.totalorder %s27, %s30
    %p39 = scmp.eq.s32.totalorder %s22, 1
    %p40 = por %p38, %p39
    %p41 = scmp.ne.s32.totalorder %s30, %s31
    %p42 = scmp.eq.s32.totalorder %s22, 0
    %p43 = por %p41, %p42
    %p44 = scmp.ne.s32.totalorder %s30, %s31
    %p45 = scmp.eq.s32.totalorder %s23, 1
    %p46 = por %p44, %p45
    %p48 = scmp.ne.s32.totalorder %s31, %s47
    %p49 = scmp.eq.s32.totalorder %s23, 0
    %p50 = por %p48, %p49
    %s52 = sadd.s32 %s51, 1
    %p55 = scmp.eq.s32.totalorder %s17, 1
    %p56 = scmp.ne.s32.totalorder %s51, %s53
    %p57 = scmp.eq.s32.totalorder %s17, 0
    %p58 = por %p56, %p57
    %p59 = scmp.ne.s32.totalorder %s51, %s53
    %p60 = scmp.eq.s32.totalorder %s22, 1
    %p61 = por %p59, %p60
    %p62 = scmp.ne.s32.totalorder %s53, %s54
    %p63 = scmp.eq.s32.totalorder %s22, 0
    %p64 = por %p62, %p63
    %p65 = scmp.ne.s32.totalorder %s53, %s54
    %p66 = scmp.eq.s32.totalorder %s23, 1
    %p67 = por %p65, %p66
    %p69 = scmp.ne.s32.totalorder %s54, %s68
    %p70 = scmp.eq.s32.totalorder %s23, 0
    %p71 = por %p69, %p70
    %s73 = sadd.s32 %s72, 1
    %p76 = scmp.eq.s32.totalorder %s17, 1
    %p77 = scmp.ne.s32.totalorder %s72, %s74
    %p78 = scmp.eq.s32.totalorder %s17, 0
    %p79 = por %p77, %p78
    %p80 = scmp.ne.s32.totalorder %s72, %s74
    %p81 = scmp.eq.s32.totalorder %s22, 1
    %p82 = por %p80, %p81
    %p83 = scmp.ne.s32.totalorder %s74, %s75
    %p84 = scmp.eq.s32.totalorder %s22, 0
    %p85 = por %p83, %p84
    %p86 = scmp.ne.s32.totalorder %s74, %s75
    %p87 = scmp.eq.s32.totalorder %s23, 1
    %p88 = por %p86, %p87
    %p90 = scmp.ne.s32.totalorder %s75, %s89
    %p91 = scmp.eq.s32.totalorder %s23, 0
    %p92 = por %p90, %p91
    %s94 = sadd.s32 %s93, 1
    %p97 = scmp.eq.s32.totalorder %s17, 1
    %p98 = scmp.ne.s32.totalorder %s93, %s95
    %p99 = scmp.eq.s32.totalorder %s17, 0
    %p100 = por %p98, %p99
    %p101 = scmp.ne.s32.totalorder %s93, %s95
    %p102 = scmp.eq.s32.totalorder %s22, 1
    %p103 = por %p101, %p102
    %p104 = scmp.ne.s32.totalorder %s95, %s96
    %p105 = scmp.eq.s32.totalorder %s22, 0
    %p106 = por %p104, %p105
    %p107 = scmp.ne.s32.totalorder %s95, %s96
    %p108 = scmp.eq.s32.totalorder %s23, 1
    %p109 = por %p107, %p108
    %p111 = scmp.ne.s32.totalorder %s96, %s110
    %p112 = scmp.eq.s32.totalorder %s23, 0
    %p113 = por %p111, %p112
    %s115 = sadd.s32 %s114, 1
    %p118 = scmp.eq.s32.totalorder %s17, 1
    %p119 = scmp.ne.s32.totalorder %s114, %s116
    %p120 = scmp.eq.s32.totalorder %s17, 0
    %p121 = por %p119, %p120
    %p122 = scmp.ne.s32.totalorder %s114, %s116
    %p123 = scmp.eq.s32.totalorder %s22, 1
    %p124 = por %p122, %p123
    %p125 = scmp.ne.s32.totalorder %s116, %s117
    %p126 = scmp.eq.s32.totalorder %s22, 0
    %p127 = por %p125, %p126
    %p128 = scmp.ne.s32.totalorder %s116, %s117
    %p129 = scmp.eq.s32.totalorder %s23, 1
    %p130 = por %p128, %p129
    %p132 = scmp.ne.s32.totalorder %s117, %s131
    %p133 = scmp.eq.s32.totalorder %s23, 0
    %p134 = por %p132, %p133
    %s136 = sadd.s32 %s135, 1
    %p139 = scmp.eq.s32.totalorder %s17, 1
    %p140 = scmp.ne.s32.totalorder %s135, %s137
    %p141 = scmp.eq.s32.totalorder %s17, 0
    %p142 = por %p140, %p141
    %p143 = scmp.ne.s32.totalorder %s135, %s137
    %p144 = scmp.eq.s32.totalorder %s22, 1
    %p145 = por %p143, %p144
    %p146 = scmp.ne.s32.totalorder %s137, %s138
    %p147 = scmp.eq.s32.totalorder %s22, 0
    %p148 = por %p146, %p147
    %p149 = scmp.ne.s32.totalorder %s137, %s138
    %p150 = scmp.eq.s32.totalorder %s23, 1
    %p151 = por %p149, %p150
    %p153 = scmp.ne.s32.totalorder %s138, %s152
    %p154 = scmp.eq.s32.totalorder %s23, 0
    %p155 = por %p153, %p154
    %s157 = sadd.s32 %s156, 1
    %p160 = scmp.eq.s32.totalorder %s17, 1
    %p161 = scmp.ne.s32.totalorder %s156, %s158
    %p162 = scmp.eq.s32.totalorder %s17, 0
    %p163 = por %p161, %p162
    %p164 = scmp.ne.s32.totalorder %s156, %s158
    %p165 = scmp.eq.s32.totalorder %s22, 1
    %p166 = por %p164, %p165
    %p167 = scmp.ne.s32.totalorder %s158, %s159
    %p168 = scmp.eq.s32.totalorder %s22, 0
    %p169 = por %p167, %p168
    %p170 = scmp.ne.s32.totalorder %s158, %s159
    %p171 = scmp.eq.s32.totalorder %s23, 1
    %p172 = por %p170, %p171
    %p174 = scmp.ne.s32.totalorder %s159, %s173
    %p175 = scmp.eq.s32.totalorder %s23, 0
    %p176 = por %p174, %p175
    %s178 = sadd.s32 %s177, 1
    %p181 = scmp.eq.s32.totalorder %s17, 1
    %p182 = scmp.ne.s32.totalorder %s177, %s179
    %p183 = scmp.eq.s32.totalorder %s17, 0
    %p184 = por %p182, %p183
    %p185 = scmp.ne.s32.totalorder %s177, %s179
    %p186 = scmp.eq.s32.totalorder %s22, 1
    %p187 = por %p185, %p186
    %p188 = scmp.ne.s32.totalorder %s179, %s180
    %p189 = scmp.eq.s32.totalorder %s22, 0
    %p190 = por %p188, %p189
    %p191 = scmp.ne.s32.totalorder %s179, %s180
    %p192 = scmp.eq.s32.totalorder %s23, 1
    %p193 = por %p191, %p192
    %p195 = scmp.ne.s32.totalorder %s180, %s194
    %p196 = scmp.eq.s32.totalorder %s23, 0
    %p197 = por %p195, %p196
    %s199 = sadd.s32 %s198, 1
    %p202 = scmp.eq.s32.totalorder %s17, 1
    %p203 = scmp.ne.s32.totalorder %s198, %s200
    %p204 = scmp.eq.s32.totalorder %s17, 0
    %p205 = por %p203, %p204
    %p206 = scmp.ne.s32.totalorder %s198, %s200
    %p207 = scmp.eq.s32.totalorder %s22, 1
    %p208 = por %p206, %p207
    %p209 = scmp.ne.s32.totalorder %s200, %s201
    %p210 = scmp.eq.s32.totalorder %s22, 0
    %p211 = por %p209, %p210
    %p212 = scmp.ne.s32.totalorder %s200, %s201
    %p213 = scmp.eq.s32.totalorder %s23, 1
    %p214 = por %p212, %p213
    %p216 = scmp.ne.s32.totalorder %s201, %s215
    %p217 = scmp.eq.s32.totalorder %s23, 0
    %p218 = por %p216, %p217
    %s220 = sadd.s32 %s219, 1
    %p223 = scmp.eq.s32.totalorder %s17, 1
    %p224 = scmp.ne.s32.totalorder %s219, %s221
    %p225 = scmp.eq.s32.totalorder %s17, 0
    %p226 = por %p224, %p225
    %p227 = scmp.ne.s32.totalorder %s219, %s221
    %p228 = scmp.eq.s32.totalorder %s22, 1
    %p229 = por %p227, %p228
    %p230 = scmp.ne.s32.totalorder %s221, %s222
    %p231 = scmp.eq.s32.totalorder %s22, 0
    %p232 = por %p230, %p231
    %p233 = scmp.ne.s32.totalorder %s221, %s222
    %p234 = scmp.eq.s32.totalorder %s23, 1
    %p235 = por %p233, %p234
    %p237 = scmp.ne.s32.totalorder %s222, %s236
    %p238 = scmp.eq.s32.totalorder %s23, 0
    %p239 = por %p237, %p238
    %s241 = sadd.s32 %s240, 1
    %p244 = scmp.eq.s32.totalorder %s17, 1
    %p245 = scmp.ne.s32.totalorder %s240, %s242
    %p246 = scmp.eq.s32.totalorder %s17, 0
    %p247 = por %p245, %p246
    %p248 = scmp.ne.s32.totalorder %s240, %s242
    %p249 = scmp.eq.s32.totalorder %s22, 1
    %p250 = por %p248, %p249
    %p251 = scmp.ne.s32.totalorder %s242, %s243
    %p252 = scmp.eq.s32.totalorder %s22, 0
    %p253 = por %p251, %p252
    %p254 = scmp.ne.s32.totalorder %s242, %s243
    %p255 = scmp.eq.s32.totalorder %s23, 1
    %p256 = por %p254, %p255
    %p258 = scmp.ne.s32.totalorder %s243, %s257
    %p259 = scmp.eq.s32.totalorder %s23, 0
    %p260 = por %p258, %p259
    %s261 = ssub.s32 %s17, %s24
    %p262 = scmp.eq.s32.totalorder %s261, 0
    %s264 = sadd.s32 %s263, 1
    %s265 = scalar_select %p262, %s263, %s264
    %p268 = pneg %p262
    %p269 = scmp.eq.s32.totalorder %s17, 1
    %p270 = por %p268, %p269
    %p271 = scmp.ne.s32.totalorder %s263, %s266
    %p272 = scmp.eq.s32.totalorder %s17, 0
    %p273 = por %p271, %p272
    %p274 = scmp.ne.s32.totalorder %s263, %s266
    %p275 = scmp.eq.s32.totalorder %s22, 1
    %p276 = por %p274, %p275
    %p277 = scmp.ne.s32.totalorder %s266, %s267
    %p278 = scmp.eq.s32.totalorder %s22, 0
    %p279 = por %p277, %p278
    %p280 = scmp.ne.s32.totalorder %s266, %s267
    %p281 = scmp.eq.s32.totalorder %s23, 1
    %p282 = por %p280, %p281
    %p284 = scmp.ne.s32.totalorder %s267, %s283
    %p285 = scmp.eq.s32.totalorder %s23, 0
    %p286 = por %p284, %p285
    %p287 = scmp.le.s32.totalorder 1, %s17
    %p288 = scmp.lt.s32.totalorder %s17, 3
    %p289 = pnand %p287, %p288
    %p290 = pneg %p289
    // Predicated region
    $region9: #{resnet_block_forward.1} parent=5 // pred_check
      _
    $region10: #{resnet_block_forward.1} parent=5 // pred_check_branch
      %292 = sbr.rel (%p289) target = $region12
    $region11: #{resnet_block_forward.1} parent=5 // pred_region
      %s293 = ssub.s32 %s17, 1
      // Predicated region
      $region13: #{resnet_block_forward.1} parent=11 // pred_check
        %p294 = pneg %p64
      $region14: #{resnet_block_forward.1} parent=11 // pred_check_branch
        %296 = sbr.rel (%p294) target = $region16
      $region15: #{resnet_block_forward.1} parent=11 // pred_region
        _
      $region16: #{resnet_block_forward.1} parent=11 // pred_fallthru
        _
      // Predicated region
      $region17: #{resnet_block_forward.1} parent=11 // pred_check
        %p297 = pneg %p85
      $region18: #{resnet_block_forward.1} parent=11 // pred_check_branch
        %299 = sbr.rel (%p297) target = $region20
      $region19: #{resnet_block_forward.1} parent=11 // pred_region
        _
      $region20: #{resnet_block_forward.1} parent=11 // pred_fallthru
        _
      // Predicated region
      $region21: #{resnet_block_forward.1} parent=11 // pred_check
        %p300 = pneg %p106
      $region22: #{resnet_block_forward.1} parent=11 // pred_check_branch
        %302 = sbr.rel (%p300) target = $region24
      $region23: #{resnet_block_forward.1} parent=11 // pred_region
        _
      $region24: #{resnet_block_forward.1} parent=11 // pred_fallthru
        _
      // Predicated region
      $region25: #{resnet_block_forward.1} parent=11 // pred_check
        %p303 = pneg %p127
      $region26: #{resnet_block_forward.1} parent=11 // pred_check_branch
        %305 = sbr.rel (%p303) target = $region28
      $region27: #{resnet_block_forward.1} parent=11 // pred_region
        _
      $region28: #{resnet_block_forward.1} parent=11 // pred_fallthru
        _
      // Predicated region
      $region29: #{resnet_block_forward.1} parent=11 // pred_check
        %p306 = pneg %p148
      $region30: #{resnet_block_forward.1} parent=11 // pred_check_branch
        %308 = sbr.rel (%p306) target = $region32
      $region31: #{resnet_block_forward.1} parent=11 // pred_region
        _
      $region32: #{resnet_block_forward.1} parent=11 // pred_fallthru
        _
      // Predicated region
      $region33: #{resnet_block_forward.1} parent=11 // pred_check
        %p309 = pneg %p169
      $region34: #{resnet_block_forward.1} parent=11 // pred_check_branch
        %311 = sbr.rel (%p309) target = $region36
      $region35: #{resnet_block_forward.1} parent=11 // pred_region
        _
      $region36: #{resnet_block_forward.1} parent=11 // pred_fallthru
        _
      // Predicated region
      $region37: #{resnet_block_forward.1} parent=11 // pred_check
        %p312 = pneg %p190
      $region38: #{resnet_block_forward.1} parent=11 // pred_check_branch
        %314 = sbr.rel (%p312) target = $region40
      $region39: #{resnet_block_forward.1} parent=11 // pred_region
        _
      $region40: #{resnet_block_forward.1} parent=11 // pred_fallthru
        _
      // Predicated region
      $region41: #{resnet_block_forward.1} parent=11 // pred_check
        %p315 = pneg %p211
      $region42: #{resnet_block_forward.1} parent=11 // pred_check_branch
        %317 = sbr.rel (%p315) target = $region44
      $region43: #{resnet_block_forward.1} parent=11 // pred_region
        _
      $region44: #{resnet_block_forward.1} parent=11 // pred_fallthru
        _
      // Predicated region
      $region45: #{resnet_block_forward.1} parent=11 // pred_check
        %p318 = pneg %p232
      $region46: #{resnet_block_forward.1} parent=11 // pred_check_branch
        %320 = sbr.rel (%p318) target = $region48
      $region47: #{resnet_block_forward.1} parent=11 // pred_region
        _
      $region48: #{resnet_block_forward.1} parent=11 // pred_fallthru
        _
      // Predicated region
      $region49: #{resnet_block_forward.1} parent=11 // pred_check
        %p321 = pneg %p253
      $region50: #{resnet_block_forward.1} parent=11 // pred_check_branch
        %323 = sbr.rel (%p321) target = $region52
      $region51: #{resnet_block_forward.1} parent=11 // pred_region
        _
      $region52: #{resnet_block_forward.1} parent=11 // pred_fallthru
        _
    $region12: #{resnet_block_forward.1} parent=5 // pred_fallthru
      _
    %p324 = scmp.lt.s32.totalorder %s17, 2
    // Predicated region
    $region53: #{resnet_block_forward.1} parent=5 // pred_check
      %p325 = pneg %p324
    $region54: #{resnet_block_forward.1} parent=5 // pred_check_branch
      %327 = sbr.rel (%p325) target = $region56
    $region55: #{resnet_block_forward.1} parent=5 // pred_region
      // Predicated region
      $region57: #{resnet_block_forward.1} parent=55 // pred_check
        %p328 = pneg %p37
      $region58: #{resnet_block_forward.1} parent=55 // pred_check_branch
        %330 = sbr.rel (%p328) target = $region60
      $region59: #{resnet_block_forward.1} parent=55 // pred_region
        %p331 = scmp.lt.s32.totalorder %s17, 1
        %s332 = scalar_select %p331, %s17, 1
        %s333 = smul.addr %s332, 2
        %s334 = smul.addr %s333, 4
        %s335 = scalar_lea.vmem %s0, %s334
      $region60: #{resnet_block_forward.1} parent=55 // pred_fallthru
        _
    $region56: #{resnet_block_forward.1} parent=5 // pred_fallthru
      _
    %p336 = scmp.le.s32.totalorder 1, %s17
    %p337 = scmp.lt.s32.totalorder %s17, 3
    %p338 = pnand %p336, %p337
    %p339 = pneg %p338
    // Predicated region
    $region61: #{resnet_block_forward.1} parent=5 // pred_check
      _
    $region62: #{resnet_block_forward.1} parent=5 // pred_check_branch
      %341 = sbr.rel (%p338) target = $region64
    $region63: #{resnet_block_forward.1} parent=5 // pred_region
      %s342 = ssub.s32 %s17, 1
      %p343 = scmp.lt.s32.totalorder %s22, 1
      %s344 = scalar_select %p343, %s22, 1
      %s345 = smul.addr %s344, 2
      %s346 = smul.addr %s345, 4
      %s347 = scalar_lea.vmem %s0, %s346
      %p348 = pneg %p43
      %p349 = pneg %p40
      %p350 = pneg %p64
      %p351 = pneg %p61
      %p352 = pneg %p85
      %p353 = pneg %p82
      %p354 = pneg %p106
      %p355 = pneg %p103
      %p356 = pneg %p127
      %p357 = pneg %p124
      %p358 = pneg %p148
      %p359 = pneg %p145
      %p360 = pneg %p169
      %p361 = pneg %p166
      %p362 = pneg %p190
      %p363 = pneg %p187
      %p364 = pneg %p211
      %p365 = pneg %p208
      %p366 = pneg %p232
      %p367 = pneg %p229
      %p368 = pneg %p253
      %p369 = pneg %p250
      %p370 = pneg %p279
      %p371 = pneg %p276
      %p372 = scmp.lt.s32.totalorder %s22, 1
      %s373 = scalar_select %p372, %s22, 1
      %s374 = smul.addr %s373, 2
      %s375 = smul.addr %s374, 8
      %s376 = scalar_lea.vmem %s11, %s375
      %p377 = scmp.lt.s32.totalorder %s22, 1
      %s378 = scalar_select %p377, %s22, 1
      %s379 = smul.addr %s378, 2
      %s380 = smul.addr %s379, 4
      %s381 = scalar_lea.vmem %s0, %s380
      %p382 = scmp.lt.s32.totalorder %s22, 1
      %s383 = scalar_select %p382, %s22, 1
      %s384 = smul.addr %s383, 2
      %s385 = smul.addr %s384, 8
      %s386 = scalar_lea.vmem %s11, %s385
      %v388 = vld [vmem:[%s381] sm:$0xf]
      %v389 = vld [vmem:[%s381 + $0x4] sm:$0xf]
      %v392 = vunpack.c.l.b16 %v388
      %v393 = vunpack.c.l.b16 %v389
      %v394 = vpack.c.b16 %v392, %v392
      %v395 = vpack.c.b16 %v393, %v393
      %vm396 = vcmask 1043456
      %v399 = vsel %vm396, 0, %v394
      %v401 = vsel %vm396, %v395, 0
      %v402 = vld [vmem:[%s1] sm:$0xf]
      %v403 = vld [vmem:[%s1 + $0x4] sm:$0xf]
      %v404 = vld [vmem:[%s1 + $0x8] sm:$0xf]
      %v405 = vld [vmem:[%s1 + $0xc] sm:$0xf]
      %v406 = vld [vmem:[%s1 + $0x10] sm:$0xf]
      %v407 = vld [vmem:[%s1 + $0x14] sm:$0xf]
      %v408 = vld [vmem:[%s1 + $0x18] sm:$0xf]
      %v409 = vld [vmem:[%s1 + $0x1c] sm:$0xf]
      %v410 = vld [vmem:[%s1 + $0x20] sm:$0xf]
      %v411 = vld [vmem:[%s1 + $0x24] sm:$0xf]
      %v412 = vld [vmem:[%s1 + $0x28] sm:$0xf]
      %v413 = vld [vmem:[%s1 + $0x2c] sm:$0xf]
      %v414 = vld [vmem:[%s1 + $0x30] sm:$0xf]
      %v415 = vld [vmem:[%s1 + $0x34] sm:$0xf]
      %v416 = vld [vmem:[%s1 + $0x38] sm:$0xf]
      %v417 = vld [vmem:[%s1 + $0x3c] sm:$0xf]
      %s418 = scalar_lea.vmem %s1, 64
      %v419 = vld [vmem:[%s418] sm:$0xf]
      %v420 = vld [vmem:[%s418 + $0x4] sm:$0xf]
      %v421 = vld [vmem:[%s418 + $0x8] sm:$0xf]
      %v422 = vld [vmem:[%s418 + $0xc] sm:$0xf]
      %v423 = vld [vmem:[%s418 + $0x10] sm:$0xf]
      %v424 = vld [vmem:[%s418 + $0x14] sm:$0xf]
      %v425 = vld [vmem:[%s418 + $0x18] sm:$0xf]
      %v426 = vld [vmem:[%s418 + $0x1c] sm:$0xf]
      %v427 = vld [vmem:[%s418 + $0x20] sm:$0xf]
      %v428 = vld [vmem:[%s418 + $0x24] sm:$0xf]
      %v429 = vld [vmem:[%s418 + $0x28] sm:$0xf]
      %v430 = vld [vmem:[%s418 + $0x2c] sm:$0xf]
      %v431 = vld [vmem:[%s418 + $0x30] sm:$0xf]
      %v432 = vld [vmem:[%s418 + $0x34] sm:$0xf]
      %v433 = vld [vmem:[%s418 + $0x38] sm:$0xf]
      %v434 = vld [vmem:[%s418 + $0x3c] sm:$0xf]
      %vm437 = vcmask 1043456
      %v438 = vrot.slane %v399, 4
      %v439 = vrot.slane %v401, 4
      %v440 = vsel %vm437, %v438, %v439
      %v458 = vunpack.c.l.b16 %v419
      %v459 = vunpack.c.l.b16 %v420
      %v460 = vunpack.c.l.b16 %v421
      %v461 = vunpack.c.l.b16 %v422
      %v462 = vunpack.c.l.b16 %v423
      %v463 = vunpack.c.l.b16 %v424
      %v464 = vunpack.c.l.b16 %v425
      %v465 = vunpack.c.l.b16 %v426
      %v466 = vunpack.c.l.b16 %v427
      %v467 = vunpack.c.l.b16 %v428
      %v468 = vunpack.c.l.b16 %v429
      %v469 = vunpack.c.l.b16 %v430
      %v470 = vunpack.c.l.b16 %v431
      %v471 = vunpack.c.l.b16 %v432
      %v472 = vunpack.c.l.b16 %v433
      %v473 = vunpack.c.l.b16 %v434
      %v474 = vpack.c.b16 %v459, %v458
      %v475 = vpack.c.b16 %v461, %v460
      %v476 = vpack.c.b16 %v463, %v462
      %v477 = vpack.c.b16 %v465, %v464
      %v478 = vpack.c.b16 %v467, %v466
      %v479 = vpack.c.b16 %v469, %v468
      %v480 = vpack.c.b16 %v471, %v470
      %v481 = vpack.c.b16 %v473, %v472
      %490 = vmatprep.subr.bf16.mxu0 0
      %491 = vmatpush1.bf16.msra.mxu0 %v474
      %492 = vmatprep.subr.bf16.mxu0 0
      %493 = vmatpush1.bf16.msra.mxu0 %v475
      %494 = vmatprep.subr.bf16.mxu0 0
      %495 = vmatpush1.bf16.msra.mxu0 %v476
      %496 = vmatprep.subr.bf16.mxu0 0
      %497 = vmatpush1.bf16.msra.mxu0 %v477
      %498 = vmatprep.subr.bf16.mxu0 0
      %499 = vmatpush1.bf16.msra.mxu0 %v478
      %500 = vmatprep.subr.bf16.mxu0 0
      %501 = vmatpush1.bf16.msra.mxu0 %v479
      %502 = vmatprep.subr.bf16.mxu0 0
      %503 = vmatpush1.bf16.msra.mxu0 %v480
      %504 = vmatprep.subr.bf16.mxu0 0
      %505 = vmatpush1.bf16.msra.mxu0 %v481
      %506 = vmatprep.subr.bf16.mxu0 0
      %507 = vmatpush1.bf16.msra.mxu0 0
      %508 = vmatprep.subr.bf16.mxu0 0
      %509 = vmatpush1.bf16.msra.mxu0 0
      %510 = vmatprep.subr.bf16.mxu0 0
      %511 = vmatpush1.bf16.msra.mxu0 0
      %512 = vmatprep.subr.bf16.mxu0 0
      %513 = vmatpush1.bf16.msra.mxu0 0
      %514 = vmatprep.subr.bf16.mxu0 0
      %515 = vmatpush1.bf16.msra.mxu0 0
      %516 = vmatprep.subr.bf16.mxu0 0
      %517 = vmatpush1.bf16.msra.mxu0 0
      %518 = vmatprep.subr.bf16.mxu0 0
      %519 = vmatpush1.bf16.msra.mxu0 0
      %520 = vmatprep.subr.bf16.mxu0 0
      %521 = vmatpush1.bf16.msra.mxu0 0
      %522 = vmatprep.mubr.bf16.mxu0 0
      %523 = vmatmul.mubr.bf16.gmra.mrb[0].mxu0 %v440
      %v524 = vpop.f32.mrb[0].mxu0
      %v525 = vadd.f32 0.0, %v524
      %v526 = vpop.f32.mrb[0].mxu0
      %v527 = vpop.f32.mrb[0].mxu0
      %v528 = vadd.f32 0.0, %v527
      %v529 = vpop.f32.mrb[0].mxu0
      %530 = vdwg.mxu0
      %vm531 = vsmask.f32 4352
      %v532 = vshrl.u32 %v399, 16
      %v534 = vrot.slane %v532, 3
      %v535 = vshll.u32 %v399, 16
      %v537 = vrot.slane %v535, 4
      %v538 = vor.u32 %v534, %v537
      %v539 = vshrl.u32 %v401, 16
      %v541 = vrot.slane %v539, 3
      %v542 = vshll.u32 %v401, 16
      %v544 = vrot.slane %v542, 4
      %v545 = vor.u32 %v541, %v544
      %v546 = vsel %vm531, %v538, %v545
      %v564 = vunpack.c.l.b16 %v402
      %v565 = vunpack.c.l.b16 %v403
      %v566 = vunpack.c.l.b16 %v404
      %v567 = vunpack.c.l.b16 %v405
      %v568 = vunpack.c.l.b16 %v406
      %v569 = vunpack.c.l.b16 %v407
      %v570 = vunpack.c.l.b16 %v408
      %v571 = vunpack.c.l.b16 %v409
      %v572 = vunpack.c.l.b16 %v410
      %v573 = vunpack.c.l.b16 %v411
      %v574 = vunpack.c.l.b16 %v412
      %v575 = vunpack.c.l.b16 %v413
      %v576 = vunpack.c.l.b16 %v414
      %v577 = vunpack.c.l.b16 %v415
      %v578 = vunpack.c.l.b16 %v416
      %v579 = vunpack.c.l.b16 %v417
      %v580 = vpack.c.b16 %v565, %v564
      %v581 = vpack.c.b16 %v567, %v566
      %v582 = vpack.c.b16 %v569, %v568
      %v583 = vpack.c.b16 %v571, %v570
      %v584 = vpack.c.b16 %v573, %v572
      %v585 = vpack.c.b16 %v575, %v574
      %v586 = vpack.c.b16 %v577, %v576
      %v587 = vpack.c.b16 %v579, %v578
      %596 = vmatprep.subr.bf16.mxu0 0
      %597 = vmatpush1.bf16.msra.mxu0 %v580
      %598 = vmatprep.subr.bf16.mxu0 0
      %599 = vmatpush1.bf16.msra.mxu0 %v581
      %600 = vmatprep.subr.bf16.mxu0 0
      %601 = vmatpush1.bf16.msra.mxu0 %v582
      %602 = vmatprep.subr.bf16.mxu0 0
      %603 = vmatpush1.bf16.msra.mxu0 %v583
      %604 = vmatprep.subr.bf16.mxu0 0
      %605 = vmatpush1.bf16.msra.mxu0 %v584
      %606 = vmatprep.subr.bf16.mxu0 0
      %607 = vmatpush1.bf16.msra.mxu0 %v585
      %608 = vmatprep.subr.bf16.mxu0 0
      %609 = vmatpush1.bf16.msra.mxu0 %v586
      %610 = vmatprep.subr.bf16.mxu0 0
      %611 = vmatpush1.bf16.msra.mxu0 %v587
      %612 = vmatprep.subr.bf16.mxu0 0
      %613 = vmatpush1.bf16.msra.mxu0 0
      %614 = vmatprep.subr.bf16.mxu0 0
      %615 = vmatpush1.bf16.msra.mxu0 0
      %616 = vmatprep.subr.bf16.mxu0 0
      %617 = vmatpush1.bf16.msra.mxu0 0
      %618 = vmatprep.subr.bf16.mxu0 0
      %619 = vmatpush1.bf16.msra.mxu0 0
      %620 = vmatprep.subr.bf16.mxu0 0
      %621 = vmatpush1.bf16.msra.mxu0 0
      %622 = vmatprep.subr.bf16.mxu0 0
      %623 = vmatpush1.bf16.msra.mxu0 0
      %624 = vmatprep.subr.bf16.mxu0 0
      %625 = vmatpush1.bf16.msra.mxu0 0
      %626 = vmatprep.subr.bf16.mxu0 0
      %627 = vmatpush1.bf16.msra.mxu0 0
      %628 = vmatprep.mubr.bf16.mxu0 0
      %629 = vmatmul.mubr.bf16.gmra.mrb[0].mxu0 %v546
      %v630 = vpop.f32.mrb[0].mxu0
      %v631 = vadd.f32 %v525, %v630
      %v632 = vpop.f32.mrb[0].mxu0
      %v633 = vpop.f32.mrb[0].mxu0
      %v634 = vadd.f32 %v528, %v633
      %v635 = vpop.f32.mrb[0].mxu0
      %636 = vdwg.mxu0
      %s637 = scalar_lea.vmem %s1, 128
      %v638 = vld [vmem:[%s637] sm:$0xf]
      %v639 = vld [vmem:[%s637 + $0x4] sm:$0xf]
      %v640 = vld [vmem:[%s637 + $0x8] sm:$0xf]
      %v641 = vld [vmem:[%s637 + $0xc] sm:$0xf]
      %v642 = vld [vmem:[%s637 + $0x10] sm:$0xf]
      %v643 = vld [vmem:[%s637 + $0x14] sm:$0xf]
      %v644 = vld [vmem:[%s637 + $0x18] sm:$0xf]
      %v645 = vld [vmem:[%s637 + $0x1c] sm:$0xf]
      %v646 = vld [vmem:[%s637 + $0x20] sm:$0xf]
      %v647 = vld [vmem:[%s637 + $0x24] sm:$0xf]
      %v648 = vld [vmem:[%s637 + $0x28] sm:$0xf]
      %v649 = vld [vmem:[%s637 + $0x2c] sm:$0xf]
      %v650 = vld [vmem:[%s637 + $0x30] sm:$0xf]
      %v651 = vld [vmem:[%s637 + $0x34] sm:$0xf]
      %v652 = vld [vmem:[%s637 + $0x38] sm:$0xf]
      %v653 = vld [vmem:[%s637 + $0x3c] sm:$0xf]
      %vm654 = vsmask.f32 3328
      %v655 = vrot.slane %v532, 4
      %v656 = vrot.slane %v535, 5
      %v657 = vor.u32 %v655, %v656
      %v658 = vrot.slane %v539, 4
      %v659 = vrot.slane %v542, 5
      %v660 = vor.u32 %v658, %v659
      %v661 = vsel %vm654, %v657, %v660
      %v679 = vunpack.c.l.b16 %v638
      %v680 = vunpack.c.l.b16 %v639
      %v681 = vunpack.c.l.b16 %v640
      %v682 = vunpack.c.l.b16 %v641
      %v683 = vunpack.c.l.b16 %v642
      %v684 = vunpack.c.l.b16 %v643
      %v685 = vunpack.c.l.b16 %v644
      %v686 = vunpack.c.l.b16 %v645
      %v687 = vunpack.c.l.b16 %v646
      %v688 = vunpack.c.l.b16 %v647
      %v689 = vunpack.c.l.b16 %v648
      %v690 = vunpack.c.l.b16 %v649
      %v691 = vunpack.c.l.b16 %v650
      %v692 = vunpack.c.l.b16 %v651
      %v693 = vunpack.c.l.b16 %v652
      %v694 = vunpack.c.l.b16 %v653
      %v695 = vpack.c.b16 %v680, %v679
      %v696 = vpack.c.b16 %v682, %v681
      %v697 = vpack.c.b16 %v684, %v683
      %v698 = vpack.c.b16 %v686, %v685
      %v699 = vpack.c.b16 %v688, %v687
      %v700 = vpack.c.b16 %v690, %v689
      %v701 = vpack.c.b16 %v692, %v691
      %v702 = vpack.c.b16 %v694, %v693
      %711 = vmatprep.subr.bf16.mxu0 0
      %712 = vmatpush1.bf16.msra.mxu0 %v695
      %713 = vmatprep.subr.bf16.mxu0 0
      %714 = vmatpush1.bf16.msra.mxu0 %v696
      %715 = vmatprep.subr.bf16.mxu0 0
      %716 = vmatpush1.bf16.msra.mxu0 %v697
      %717 = vmatprep.subr.bf16.mxu0 0
      %718 = vmatpush1.bf16.msra.mxu0 %v698
      %719 = vmatprep.subr.bf16.mxu0 0
      %720 = vmatpush1.bf16.msra.mxu0 %v699
      %721 = vmatprep.subr.bf16.mxu0 0
      %722 = vmatpush1.bf16.msra.mxu0 %v700
      %723 = vmatprep.subr.bf16.mxu0 0
      %724 = vmatpush1.bf16.msra.mxu0 %v701
      %725 = vmatprep.subr.bf16.mxu0 0
      %726 = vmatpush1.bf16.msra.mxu0 %v702
      %727 = vmatprep.subr.bf16.mxu0 0
      %728 = vmatpush1.bf16.msra.mxu0 0
      %729 = vmatprep.subr.bf16.mxu0 0
      %730 = vmatpush1.bf16.msra.mxu0 0
      %731 = vmatprep.subr.bf16.mxu0 0
      %732 = vmatpush1.bf16.msra.mxu0 0
      %733 = vmatprep.subr.bf16.mxu0 0
      %734 = vmatpush1.bf16.msra.mxu0 0
      %735 = vmatprep.subr.bf16.mxu0 0
      %736 = vmatpush1.bf16.msra.mxu0 0
      %737 = vmatprep.subr.bf16.mxu0 0
      %738 = vmatpush1.bf16.msra.mxu0 0
      %739 = vmatprep.subr.bf16.mxu0 0
      %740 = vmatpush1.bf16.msra.mxu0 0
      %741 = vmatprep.subr.bf16.mxu0 0
      %742 = vmatpush1.bf16.msra.mxu0 0
      %743 = vmatprep.mubr.bf16.mxu0 0
      %744 = vmatmul.mubr.bf16.gmra.mrb[0].mxu0 %v661
      %v745 = vpop.f32.mrb[0].mxu0
      %v746 = vadd.f32 0.0, %v745
      %v747 = vpop.f32.mrb[0].mxu0
      %v748 = vpop.f32.mrb[0].mxu0
      %v749 = vadd.f32 0.0, %v748
      %v750 = vpop.f32.mrb[0].mxu0
      %751 = vdwg.mxu0
      %v752 = vadd.f32 %v631, %v746
      %v753 = vadd.f32 %v634, %v749
      %v754 = vld [vmem:[%s2] sm:$0x1]
      %v756 = vlaneseq
      %v757 = vshrl.u32 %v756, 7
      %v758 = vsub.s32 0, %v757
      %v759 = vrot.slane %v754, %v758
      %v761 = vadd.f32 %v752, %v759
      %v762 = vadd.f32 %v753, %v759
      %v763 = vmul.f32 %v761, %v761
      %v764 = vmul.f32 %v762, %v762
      %765 = vadd.xlane.f32.xlu0 %v763
      %v766 = vpop.xlane.xlu0 %765
      %767 = vadd.xlane.f32.xlu0 %v764
      %v768 = vpop.xlane.xlu0 %767
      %v769 = vmax.f32 %v766, 1e-08
      %v770 = vmax.f32 %v768, 1e-08
      %v771 = vrsqrt.pop %v769
      %v772 = vrsqrt.pop %v770
      %v773 = vmul.f32 %v771, 2.828427
      %v774 = vmul.f32 %v772, 2.828427
      %v775 = vmul.f32 %v761, %v773
      %v776 = vmul.f32 %v762, %v774
      %v777 = vxor.u32 %v775, 2147483648
      %v778 = vxor.u32 %v776, 2147483648
      %v779 = vmul.f32 %v777, 1.442695
      %v780 = vpow.pop %v779
      %v781 = vmul.f32 %v778, 1.442695
      %v782 = vpow.pop %v781
      %v783 = vadd.f32 %v780, 1.0
      %v784 = vadd.f32 %v782, 1.0
      %v785 = vrcp.pop %v783
      %v786 = vmul.f32 1.0, %v785
      %v787 = vrcp.pop %v784
      %v788 = vmul.f32 1.0, %v787
      %v789 = vmul.f32 %v775, %v786
      %v790 = vmul.f32 %v776, %v788
      %v791 = vpack.c.bf16 %v790, %v789
      %v793 = vrot.slane %v791, 4
      %v795 = vsel %vm396, 0, %v793
      %v796 = vsel %vm396, %v793, 0
      %v797 = vld [vmem:[%s3] sm:$0xf]
      %v798 = vld [vmem:[%s3 + $0x4] sm:$0xf]
      %v799 = vld [vmem:[%s3 + $0x8] sm:$0xf]
      %v800 = vld [vmem:[%s3 + $0xc] sm:$0xf]
      %v801 = vld [vmem:[%s3 + $0x10] sm:$0xf]
      %v802 = vld [vmem:[%s3 + $0x14] sm:$0xf]
      %v803 = vld [vmem:[%s3 + $0x18] sm:$0xf]
      %v804 = vld [vmem:[%s3 + $0x1c] sm:$0xf]
      %v805 = vld [vmem:[%s3 + $0x20] sm:$0xf]
      %v806 = vld [vmem:[%s3 + $0x24] sm:$0xf]
      %v807 = vld [vmem:[%s3 + $0x28] sm:$0xf]
      %v808 = vld [vmem:[%s3 + $0x2c] sm:$0xf]
      %v809 = vld [vmem:[%s3 + $0x30] sm:$0xf]
      %v810 = vld [vmem:[%s3 + $0x34] sm:$0xf]
      %v811 = vld [vmem:[%s3 + $0x38] sm:$0xf]
      %v812 = vld [vmem:[%s3 + $0x3c] sm:$0xf]
      %s813 = scalar_lea.vmem %s3, 64
      %v814 = vld [vmem:[%s813] sm:$0xf]
      %v815 = vld [vmem:[%s813 + $0x4] sm:$0xf]
      %v816 = vld [vmem:[%s813 + $0x8] sm:$0xf]
      %v817 = vld [vmem:[%s813 + $0xc] sm:$0xf]
      %v818 = vld [vmem:[%s813 + $0x10] sm:$0xf]
      %v819 = vld [vmem:[%s813 + $0x14] sm:$0xf]
      %v820 = vld [vmem:[%s813 + $0x18] sm:$0xf]
      %v821 = vld [vmem:[%s813 + $0x1c] sm:$0xf]
      %v822 = vld [vmem:[%s813 + $0x20] sm:$0xf]
      %v823 = vld [vmem:[%s813 + $0x24] sm:$0xf]
      %v824 = vld [vmem:[%s813 + $0x28] sm:$0xf]
      %v825 = vld [vmem:[%s813 + $0x2c] sm:$0xf]
      %v826 = vld [vmem:[%s813 + $0x30] sm:$0xf]
      %v827 = vld [vmem:[%s813 + $0x34] sm:$0xf]
      %v828 = vld [vmem:[%s813 + $0x38] sm:$0xf]
      %v829 = vld [vmem:[%s813 + $0x3c] sm:$0xf]
      %v832 = vrot.slane %v795, 4
      %v833 = vrot.slane %v796, 4
      %v834 = vsel %vm437, %v832, %v833
      %v852 = vunpack.c.l.b16 %v814
      %v853 = vunpack.c.l.b16 %v815
      %v854 = vunpack.c.l.b16 %v816
      %v855 = vunpack.c.l.b16 %v817
      %v856 = vunpack.c.l.b16 %v818
      %v857 = vunpack.c.l.b16 %v819
      %v858 = vunpack.c.l.b16 %v820
      %v859 = vunpack.c.l.b16 %v821
      %v860 = vunpack.c.l.b16 %v822
      %v861 = vunpack.c.l.b16 %v823
      %v862 = vunpack.c.l.b16 %v824
      %v863 = vunpack.c.l.b16 %v825
      %v864 = vunpack.c.l.b16 %v826
      %v865 = vunpack.c.l.b16 %v827
      %v866 = vunpack.c.l.b16 %v828
      %v867 = vunpack.c.l.b16 %v829
      %v868 = vpack.c.b16 %v853, %v852
      %v869 = vpack.c.b16 %v855, %v854
      %v870 = vpack.c.b16 %v857, %v856
      %v871 = vpack.c.b16 %v859, %v858
      %v872 = vpack.c.b16 %v861, %v860
      %v873 = vpack.c.b16 %v863, %v862
      %v874 = vpack.c.b16 %v865, %v864
      %v875 = vpack.c.b16 %v867, %v866
      %884 = vmatprep.subr.bf16.mxu0 0
      %885 = vmatpush1.bf16.msra.mxu0 %v868
      %886 = vmatprep.subr.bf16.mxu0 0
      %887 = vmatpush1.bf16.msra.mxu0 %v869
      %888 = vmatprep.subr.bf16.mxu0 0
      %889 = vmatpush1.bf16.msra.mxu0 %v870
      %890 = vmatprep.subr.bf16.mxu0 0
      %891 = vmatpush1.bf16.msra.mxu0 %v871
      %892 = vmatprep.subr.bf16.mxu0 0
      %893 = vmatpush1.bf16.msra.mxu0 %v872
      %894 = vmatprep.subr.bf16.mxu0 0
      %895 = vmatpush1.bf16.msra.mxu0 %v873
      %896 = vmatprep.subr.bf16.mxu0 0
      %897 = vmatpush1.bf16.msra.mxu0 %v874
      %898 = vmatprep.subr.bf16.mxu0 0
      %899 = vmatpush1.bf16.msra.mxu0 %v875
      %900 = vmatprep.subr.bf16.mxu0 0
      %901 = vmatpush1.bf16.msra.mxu0 0
      %902 = vmatprep.subr.bf16.mxu0 0
      %903 = vmatpush1.bf16.msra.mxu0 0
      %904 = vmatprep.subr.bf16.mxu0 0
      %905 = vmatpush1.bf16.msra.mxu0 0
      %906 = vmatprep.subr.bf16.mxu0 0
      %907 = vmatpush1.bf16.msra.mxu0 0
      %908 = vmatprep.subr.bf16.mxu0 0
      %909 = vmatpush1.bf16.msra.mxu0 0
      %910 = vmatprep.subr.bf16.mxu0 0
      %911 = vmatpush1.bf16.msra.mxu0 0
      %912 = vmatprep.subr.bf16.mxu0 0
      %913 = vmatpush1.bf16.msra.mxu0 0
      %914 = vmatprep.subr.bf16.mxu0 0
      %915 = vmatpush1.bf16.msra.mxu0 0
      %916 = vmatprep.mubr.bf16.mxu0 0
      %917 = vmatmul.mubr.bf16.gmra.mrb[0].mxu0 %v834
      %v918 = vpop.f32.mrb[0].mxu0
      %v919 = vadd.f32 0.0, %v918
      %v920 = vpop.f32.mrb[0].mxu0
      %v921 = vpop.f32.mrb[0].mxu0
      %v922 = vadd.f32 0.0, %v921
      %v923 = vpop.f32.mrb[0].mxu0
      %924 = vdwg.mxu0
      %v925 = vshrl.u32 %v795, 16
      %v927 = vrot.slane %v925, 3
      %v928 = vshll.u32 %v795, 16
      %v930 = vrot.slane %v928, 4
      %v931 = vor.u32 %v927, %v930
      %v932 = vshrl.u32 %v796, 16
      %v934 = vrot.slane %v932, 3
      %v935 = vshll.u32 %v796, 16
      %v937 = vrot.slane %v935, 4
      %v938 = vor.u32 %v934, %v937
      %v939 = vsel %vm531, %v931, %v938
      %v957 = vunpack.c.l.b16 %v797
      %v958 = vunpack.c.l.b16 %v798
      %v959 = vunpack.c.l.b16 %v799
      %v960 = vunpack.c.l.b16 %v800
      %v961 = vunpack.c.l.b16 %v801
      %v962 = vunpack.c.l.b16 %v802
      %v963 = vunpack.c.l.b16 %v803
      %v964 = vunpack.c.l.b16 %v804
      %v965 = vunpack.c.l.b16 %v805
      %v966 = vunpack.c.l.b16 %v806
      %v967 = vunpack.c.l.b16 %v807
      %v968 = vunpack.c.l.b16 %v808
      %v969 = vunpack.c.l.b16 %v809
      %v970 = vunpack.c.l.b16 %v810
      %v971 = vunpack.c.l.b16 %v811
      %v972 = vunpack.c.l.b16 %v812
      %v973 = vpack.c.b16 %v958, %v957
      %v974 = vpack.c.b16 %v960, %v959
      %v975 = vpack.c.b16 %v962, %v961
      %v976 = vpack.c.b16 %v964, %v963
      %v977 = vpack.c.b16 %v966, %v965
      %v978 = vpack.c.b16 %v968, %v967
      %v979 = vpack.c.b16 %v970, %v969
      %v980 = vpack.c.b16 %v972, %v971
      %989 = vmatprep.subr.bf16.mxu0 0
      %990 = vmatpush1.bf16.msra.mxu0 %v973
      %991 = vmatprep.subr.bf16.mxu0 0
      %992 = vmatpush1.bf16.msra.mxu0 %v974
      %993 = vmatprep.subr.bf16.mxu0 0
      %994 = vmatpush1.bf16.msra.mxu0 %v975
      %995 = vmatprep.subr.bf16.mxu0 0
      %996 = vmatpush1.bf16.msra.mxu0 %v976
      %997 = vmatprep.subr.bf16.mxu0 0
      %998 = vmatpush1.bf16.msra.mxu0 %v977
      %999 = vmatprep.subr.bf16.mxu0 0
      %1000 = vmatpush1.bf16.msra.mxu0 %v978
      %1001 = vmatprep.subr.bf16.mxu0 0
      %1002 = vmatpush1.bf16.msra.mxu0 %v979
      %1003 = vmatprep.subr.bf16.mxu0 0
      %1004 = vmatpush1.bf16.msra.mxu0 %v980
      %1005 = vmatprep.subr.bf16.mxu0 0
      %1006 = vmatpush1.bf16.msra.mxu0 0
      %1007 = vmatprep.subr.bf16.mxu0 0
      %1008 = vmatpush1.bf16.msra.mxu0 0
      %1009 = vmatprep.subr.bf16.mxu0 0
      %1010 = vmatpush1.bf16.msra.mxu0 0
      %1011 = vmatprep.subr.bf16.mxu0 0
      %1012 = vmatpush1.bf16.msra.mxu0 0
      %1013 = vmatprep.subr.bf16.mxu0 0
      %1014 = vmatpush1.bf16.msra.mxu0 0
      %1015 = vmatprep.subr.bf16.mxu0 0
      %1016 = vmatpush1.bf16.msra.mxu0 0
      %1017 = vmatprep.subr.bf16.mxu0 0
      %1018 = vmatpush1.bf16.msra.mxu0 0
      %1019 = vmatprep.subr.bf16.mxu0 0
      %1020 = vmatpush1.bf16.msra.mxu0 0
      %1021 = vmatprep.mubr.bf16.mxu0 0
      %1022 = vmatmul.mubr.bf16.gmra.mrb[0].mxu0 %v939
      %v1023 = vpop.f32.mrb[0].mxu0
      %v1024 = vadd.f32 %v919, %v1023
      %v1025 = vpop.f32.mrb[0].mxu0
      %v1026 = vpop.f32.mrb[0].mxu0
      %v1027 = vadd.f32 %v922, %v1026
      %v1028 = vpop.f32.mrb[0].mxu0
      %1029 = vdwg.mxu0
      %s1030 = scalar_lea.vmem %s3, 128
      %v1031 = vld [vmem:[%s1030] sm:$0xf]
      %v1032 = vld [vmem:[%s1030 + $0x4] sm:$0xf]
      %v1033 = vld [vmem:[%s1030 + $0x8] sm:$0xf]
      %v1034 = vld [vmem:[%s1030 + $0xc] sm:$0xf]
      %v1035 = vld [vmem:[%s1030 + $0x10] sm:$0xf]
      %v1036 = vld [vmem:[%s1030 + $0x14] sm:$0xf]
      %v1037 = vld [vmem:[%s1030 + $0x18] sm:$0xf]
      %v1038 = vld [vmem:[%s1030 + $0x1c] sm:$0xf]
      %v1039 = vld [vmem:[%s1030 + $0x20] sm:$0xf]
      %v1040 = vld [vmem:[%s1030 + $0x24] sm:$0xf]
      %v1041 = vld [vmem:[%s1030 + $0x28] sm:$0xf]
      %v1042 = vld [vmem:[%s1030 + $0x2c] sm:$0xf]
      %v1043 = vld [vmem:[%s1030 + $0x30] sm:$0xf]
      %v1044 = vld [vmem:[%s1030 + $0x34] sm:$0xf]
      %v1045 = vld [vmem:[%s1030 + $0x38] sm:$0xf]
      %v1046 = vld [vmem:[%s1030 + $0x3c] sm:$0xf]
      %v1047 = vrot.slane %v925, 4
      %v1048 = vrot.slane %v928, 5
      %v1049 = vor.u32 %v1047, %v1048
      %v1050 = vrot.slane %v932, 4
      %v1051 = vrot.slane %v935, 5
      %v1052 = vor.u32 %v1050, %v1051
      %v1053 = vsel %vm654, %v1049, %v1052
      %v1071 = vunpack.c.l.b16 %v1031
      %v1072 = vunpack.c.l.b16 %v1032
      %v1073 = vunpack.c.l.b16 %v1033
      %v1074 = vunpack.c.l.b16 %v1034
      %v1075 = vunpack.c.l.b16 %v1035
      %v1076 = vunpack.c.l.b16 %v1036
      %v1077 = vunpack.c.l.b16 %v1037
      %v1078 = vunpack.c.l.b16 %v1038
      %v1079 = vunpack.c.l.b16 %v1039
      %v1080 = vunpack.c.l.b16 %v1040
      %v1081 = vunpack.c.l.b16 %v1041
      %v1082 = vunpack.c.l.b16 %v1042
      %v1083 = vunpack.c.l.b16 %v1043
      %v1084 = vunpack.c.l.b16 %v1044
      %v1085 = vunpack.c.l.b16 %v1045
      %v1086 = vunpack.c.l.b16 %v1046
      %v1087 = vpack.c.b16 %v1072, %v1071
      %v1088 = vpack.c.b16 %v1074, %v1073
      %v1089 = vpack.c.b16 %v1076, %v1075
      %v1090 = vpack.c.b16 %v1078, %v1077
      %v1091 = vpack.c.b16 %v1080, %v1079
      %v1092 = vpack.c.b16 %v1082, %v1081
      %v1093 = vpack.c.b16 %v1084, %v1083
      %v1094 = vpack.c.b16 %v1086, %v1085
      %1103 = vmatprep.subr.bf16.mxu0 0
      %1104 = vmatpush1.bf16.msra.mxu0 %v1087
      %1105 = vmatprep.subr.bf16.mxu0 0
      %1106 = vmatpush1.bf16.msra.mxu0 %v1088
      %1107 = vmatprep.subr.bf16.mxu0 0
      %1108 = vmatpush1.bf16.msra.mxu0 %v1089
      %1109 = vmatprep.subr.bf16.mxu0 0
      %1110 = vmatpush1.bf16.msra.mxu0 %v1090
      %1111 = vmatprep.subr.bf16.mxu0 0
      %1112 = vmatpush1.bf16.msra.mxu0 %v1091
      %1113 = vmatprep.subr.bf16.mxu0 0
      %1114 = vmatpush1.bf16.msra.mxu0 %v1092
      %1115 = vmatprep.subr.bf16.mxu0 0
      %1116 = vmatpush1.bf16.msra.mxu0 %v1093
      %1117 = vmatprep.subr.bf16.mxu0 0
      %1118 = vmatpush1.bf16.msra.mxu0 %v1094
      %1119 = vmatprep.subr.bf16.mxu0 0
      %1120 = vmatpush1.bf16.msra.mxu0 0
      %1121 = vmatprep.subr.bf16.mxu0 0
      %1122 = vmatpush1.bf16.msra.mxu0 0
      %1123 = vmatprep.subr.bf16.mxu0 0
      %1124 = vmatpush1.bf16.msra.mxu0 0
      %1125 = vmatprep.subr.bf16.mxu0 0
      %1126 = vmatpush1.bf16.msra.mxu0 0
      %1127 = vmatprep.subr.bf16.mxu0 0
      %1128 = vmatpush1.bf16.msra.mxu0 0
      %1129 = vmatprep.subr.bf16.mxu0 0
      %1130 = vmatpush1.bf16.msra.mxu0 0
      %1131 = vmatprep.subr.bf16.mxu0 0
      %1132 = vmatpush1.bf16.msra.mxu0 0
      %1133 = vmatprep.subr.bf16.mxu0 0
      %1134 = vmatpush1.bf16.msra.mxu0 0
      %1135 = vmatprep.mubr.bf16.mxu0 0
      %1136 = vmatmul.mubr.bf16.gmra.mrb[0].mxu0 %v1053
      %v1137 = vpop.f32.mrb[0].mxu0
      %v1138 = vadd.f32 0.0, %v1137
      %v1139 = vpop.f32.mrb[0].mxu0
      %v1140 = vpop.f32.mrb[0].mxu0
      %v1141 = vadd.f32 0.0, %v1140
      %v1142 = vpop.f32.mrb[0].mxu0
      %1143 = vdwg.mxu0
      %v1144 = vadd.f32 %v1024, %v1138
      %v1145 = vadd.f32 %v1027, %v1141
      %v1146 = vld [vmem:[%s4] sm:$0x1]
      %v1148 = vlaneseq
      %v1149 = vshrl.u32 %v1148, 7
      %v1150 = vsub.s32 0, %v1149
      %v1151 = vrot.slane %v1146, %v1150
      %v1153 = vadd.f32 %v1144, %v1151
      %v1154 = vadd.f32 %v1145, %v1151
      %v1155 = vmul.f32 %v1153, %v1153
      %v1156 = vmul.f32 %v1154, %v1154
      %1157 = vadd.xlane.f32.xlu0 %v1155
      %v1158 = vpop.xlane.xlu0 %1157
      %1159 = vadd.xlane.f32.xlu0 %v1156
      %v1160 = vpop.xlane.xlu0 %1159
      %v1161 = vmax.f32 %v1158, 1e-08
      %v1162 = vmax.f32 %v1160, 1e-08
      %v1163 = vrsqrt.pop %v1161
      %v1164 = vrsqrt.pop %v1162
      %v1165 = vmul.f32 %v1163, 2.828427
      %v1166 = vmul.f32 %v1164, 2.828427
      %v1167 = vmul.f32 %v1153, %v1165
      %v1168 = vmul.f32 %v1154, %v1166
      %v1169 = vxor.u32 %v1167, 2147483648
      %v1170 = vxor.u32 %v1168, 2147483648
      %v1171 = vmul.f32 %v1169, 1.442695
      %v1172 = vpow.pop %v1171
      %v1173 = vmul.f32 %v1170, 1.442695
      %v1174 = vpow.pop %v1173
      %v1175 = vadd.f32 %v1172, 1.0
      %v1176 = vadd.f32 %v1174, 1.0
      %v1177 = vrcp.pop %v1175
      %v1178 = vmul.f32 1.0, %v1177
      %v1179 = vrcp.pop %v1176
      %v1180 = vmul.f32 1.0, %v1179
      %v1181 = vmul.f32 %v1167, %v1178
      %v1182 = vmul.f32 %v1168, %v1180
      %v1183 = vadd.f32 %v1181, %v1182
      %v1184 = vrot.slane %v1183, 4
      %v1185 = vadd.f32 %v1183, %v1184
      %v1186 = vrot.slane %v1185, 2
      %v1187 = vadd.f32 %v1185, %v1186
      %v1188 = vrot.slane %v1187, 1
      %v1189 = vadd.f32 %v1187, %v1188
      %v1190 = vmul.f32 %v1189, 0.0625
      %v1191 = vpack.c.bf16 %v1190, %v1190
      %v1192 = vld [vmem:[%s5] sm:$0xf]
      %v1193 = vld [vmem:[%s5 + $0x4] sm:$0xf]
      %v1194 = vld [vmem:[%s5 + $0x8] sm:$0xf]
      %v1195 = vld [vmem:[%s5 + $0xc] sm:$0xf]
      %v1196 = vld [vmem:[%s5 + $0x10] sm:$0xf]
      %v1197 = vld [vmem:[%s5 + $0x14] sm:$0xf]
      %v1198 = vld [vmem:[%s5 + $0x18] sm:$0xf]
      %v1199 = vld [vmem:[%s5 + $0x1c] sm:$0xf]
      %v1200 = vld [vmem:[%s5 + $0x20] sm:$0xf]
      %v1201 = vld [vmem:[%s5 + $0x24] sm:$0xf]
      %v1202 = vld [vmem:[%s5 + $0x28] sm:$0xf]
      %v1203 = vld [vmem:[%s5 + $0x2c] sm:$0xf]
      %v1204 = vld [vmem:[%s5 + $0x30] sm:$0xf]
      %v1205 = vld [vmem:[%s5 + $0x34] sm:$0xf]
      %v1206 = vld [vmem:[%s5 + $0x38] sm:$0xf]
      %v1207 = vld [vmem:[%s5 + $0x3c] sm:$0xf]
      %v1208 = vld [vmem:[%s6] sm:$0x1]
      %v1225 = vunpack.c.l.b16 %v1192
      %v1226 = vunpack.c.l.b16 %v1193
      %v1227 = vunpack.c.l.b16 %v1194
      %v1228 = vunpack.c.l.b16 %v1195
      %v1229 = vunpack.c.l.b16 %v1196
      %v1230 = vunpack.c.l.b16 %v1197
      %v1231 = vunpack.c.l.b16 %v1198
      %v1232 = vunpack.c.l.b16 %v1199
      %v1233 = vunpack.c.l.b16 %v1200
      %v1234 = vunpack.c.l.b16 %v1201
      %v1235 = vunpack.c.l.b16 %v1202
      %v1236 = vunpack.c.l.b16 %v1203
      %v1237 = vunpack.c.l.b16 %v1204
      %v1238 = vunpack.c.l.b16 %v1205
      %v1239 = vunpack.c.l.b16 %v1206
      %v1240 = vunpack.c.l.b16 %v1207
      %v1241 = vpack.c.b16 %v1226, %v1225
      %v1242 = vpack.c.b16 %v1228, %v1227
      %v1243 = vpack.c.b16 %v1230, %v1229
      %v1244 = vpack.c.b16 %v1232, %v1231
      %v1245 = vpack.c.b16 %v1234, %v1233
      %v1246 = vpack.c.b16 %v1236, %v1235
      %v1247 = vpack.c.b16 %v1238, %v1237
      %v1248 = vpack.c.b16 %v1240, %v1239
      %1257 = vmatprep.subr.bf16.mxu0 0
      %1258 = vmatpush1.bf16.msra.mxu0 %v1241
      %1259 = vmatprep.subr.bf16.mxu0 0
      %1260 = vmatpush1.bf16.msra.mxu0 %v1242
      %1261 = vmatprep.subr.bf16.mxu0 0
      %1262 = vmatpush1.bf16.msra.mxu0 %v1243
      %1263 = vmatprep.subr.bf16.mxu0 0
      %1264 = vmatpush1.bf16.msra.mxu0 %v1244
      %1265 = vmatprep.subr.bf16.mxu0 0
      %1266 = vmatpush1.bf16.msra.mxu0 %v1245
      %1267 = vmatprep.subr.bf16.mxu0 0
      %1268 = vmatpush1.bf16.msra.mxu0 %v1246
      %1269 = vmatprep.subr.bf16.mxu0 0
      %1270 = vmatpush1.bf16.msra.mxu0 %v1247
      %1271 = vmatprep.subr.bf16.mxu0 0
      %1272 = vmatpush1.bf16.msra.mxu0 %v1248
      %1273 = vmatprep.subr.bf16.mxu0 0
      %1274 = vmatpush1.bf16.msra.mxu0 0
      %1275 = vmatprep.subr.bf16.mxu0 0
      %1276 = vmatpush1.bf16.msra.mxu0 0
      %1277 = vmatprep.subr.bf16.mxu0 0
      %1278 = vmatpush1.bf16.msra.mxu0 0
      %1279 = vmatprep.subr.bf16.mxu0 0
      %1280 = vmatpush1.bf16.msra.mxu0 0
      %1281 = vmatprep.subr.bf16.mxu0 0
      %1282 = vmatpush1.bf16.msra.mxu0 0
      %1283 = vmatprep.subr.bf16.mxu0 0
      %1284 = vmatpush1.bf16.msra.mxu0 0
      %1285 = vmatprep.subr.bf16.mxu0 0
      %1286 = vmatpush1.bf16.msra.mxu0 0
      %1287 = vmatprep.subr.bf16.mxu0 0
      %1288 = vmatpush1.bf16.msra.mxu0 0
      %1289 = vmatprep.mubr.bf16.mxu0 0
      %1290 = vmatmul.mubr.bf16.gmra.mrb[0].mxu0 %v1191
      %v1291 = vpop.f32.mrb[0].mxu0
      %v1292 = vadd.f32 %v1208, %v1291
      %v1293 = vpop.f32.mrb[0].mxu0
      %v1294 = vpop.f32.mrb[0].mxu0
      %v1295 = vpop.f32.mrb[0].mxu0
      %1296 = vdwg.mxu0
      %v1297 = vxor.u32 %v1292, 2147483648
      %v1298 = vmul.f32 %v1297, 1.442695
      %v1299 = vpow.pop %v1298
      %v1300 = vadd.f32 %v1299, 1.0
      %v1301 = vrcp.pop %v1300
      %v1302 = vmul.f32 1.0, %v1301
      %v1303 = vmul.f32 %v1292, %v1302
      %v1304 = vpack.c.bf16 %v1303, %v1303
      %v1305 = vld [vmem:[%s7] sm:$0xf]
      %v1306 = vld [vmem:[%s7 + $0x4] sm:$0xf]
      %v1307 = vld [vmem:[%s7 + $0x8] sm:$0xf]
      %v1308 = vld [vmem:[%s7 + $0xc] sm:$0xf]
      %v1309 = vld [vmem:[%s7 + $0x10] sm:$0xf]
      %v1310 = vld [vmem:[%s7 + $0x14] sm:$0xf]
      %v1311 = vld [vmem:[%s7 + $0x18] sm:$0xf]
      %v1312 = vld [vmem:[%s7 + $0x1c] sm:$0xf]
      %v1313 = vld [vmem:[%s7 + $0x20] sm:$0xf]
      %v1314 = vld [vmem:[%s7 + $0x24] sm:$0xf]
      %v1315 = vld [vmem:[%s7 + $0x28] sm:$0xf]
      %v1316 = vld [vmem:[%s7 + $0x2c] sm:$0xf]
      %v1317 = vld [vmem:[%s7 + $0x30] sm:$0xf]
      %v1318 = vld [vmem:[%s7 + $0x34] sm:$0xf]
      %v1319 = vld [vmem:[%s7 + $0x38] sm:$0xf]
      %v1320 = vld [vmem:[%s7 + $0x3c] sm:$0xf]
      %v1321 = vld [vmem:[%s8] sm:$0x1]
      %v1338 = vunpack.c.l.b16 %v1305
      %v1339 = vunpack.c.l.b16 %v1306
      %v1340 = vunpack.c.l.b16 %v1307
      %v1341 = vunpack.c.l.b16 %v1308
      %v1342 = vunpack.c.l.b16 %v1309
      %v1343 = vunpack.c.l.b16 %v1310
      %v1344 = vunpack.c.l.b16 %v1311
      %v1345 = vunpack.c.l.b16 %v1312
      %v1346 = vunpack.c.l.b16 %v1313
      %v1347 = vunpack.c.l.b16 %v1314
      %v1348 = vunpack.c.l.b16 %v1315
      %v1349 = vunpack.c.l.b16 %v1316
      %v1350 = vunpack.c.l.b16 %v1317
      %v1351 = vunpack.c.l.b16 %v1318
      %v1352 = vunpack.c.l.b16 %v1319
      %v1353 = vunpack.c.l.b16 %v1320
      %v1354 = vpack.c.b16 %v1339, %v1338
      %v1355 = vpack.c.b16 %v1341, %v1340
      %v1356 = vpack.c.b16 %v1343, %v1342
      %v1357 = vpack.c.b16 %v1345, %v1344
      %v1358 = vpack.c.b16 %v1347, %v1346
      %v1359 = vpack.c.b16 %v1349, %v1348
      %v1360 = vpack.c.b16 %v1351, %v1350
      %v1361 = vpack.c.b16 %v1353, %v1352
      %1370 = vmatprep.subr.bf16.mxu0 0
      %1371 = vmatpush1.bf16.msra.mxu0 %v1354
      %1372 = vmatprep.subr.bf16.mxu0 0
      %1373 = vmatpush1.bf16.msra.mxu0 %v1355
      %1374 = vmatprep.subr.bf16.mxu0 0
      %1375 = vmatpush1.bf16.msra.mxu0 %v1356
      %1376 = vmatprep.subr.bf16.mxu0 0
      %1377 = vmatpush1.bf16.msra.mxu0 %v1357
      %1378 = vmatprep.subr.bf16.mxu0 0
      %1379 = vmatpush1.bf16.msra.mxu0 %v1358
      %1380 = vmatprep.subr.bf16.mxu0 0
      %1381 = vmatpush1.bf16.msra.mxu0 %v1359
      %1382 = vmatprep.subr.bf16.mxu0 0
      %1383 = vmatpush1.bf16.msra.mxu0 %v1360
      %1384 = vmatprep.subr.bf16.mxu0 0
      %1385 = vmatpush1.bf16.msra.mxu0 %v1361
      %1386 = vmatprep.subr.bf16.mxu0 0
      %1387 = vmatpush1.bf16.msra.mxu0 0
      %1388 = vmatprep.subr.bf16.mxu0 0
      %1389 = vmatpush1.bf16.msra.mxu0 0
      %1390 = vmatprep.subr.bf16.mxu0 0
      %1391 = vmatpush1.bf16.msra.mxu0 0
      %1392 = vmatprep.subr.bf16.mxu0 0
      %1393 = vmatpush1.bf16.msra.mxu0 0
      %1394 = vmatprep.subr.bf16.mxu0 0
      %1395 = vmatpush1.bf16.msra.mxu0 0
      %1396 = vmatprep.subr.bf16.mxu0 0
      %1397 = vmatpush1.bf16.msra.mxu0 0
      %1398 = vmatprep.subr.bf16.mxu0 0
      %1399 = vmatpush1.bf16.msra.mxu0 0
      %1400 = vmatprep.subr.bf16.mxu0 0
      %1401 = vmatpush1.bf16.msra.mxu0 0
      %1402 = vmatprep.mubr.bf16.mxu0 0
      %1403 = vmatmul.mubr.bf16.gmra.mrb[0].mxu0 %v1304
      %v1404 = vpop.f32.mrb[0].mxu0
      %v1405 = vadd.f32 %v1321, %v1404
      %v1406 = vpop.f32.mrb[0].mxu0
      %v1407 = vpop.f32.mrb[0].mxu0
      %v1408 = vpop.f32.mrb[0].mxu0
      %1409 = vdwg.mxu0
      %v1410 = vxor.u32 %v1405, 2147483648
      %v1411 = vmul.f32 %v1410, 1.442695
      %v1412 = vpow.pop %v1411
      %v1413 = vadd.f32 %v1412, 1.0
      %v1414 = vrcp.pop %v1413
      %v1415 = vmul.f32 1.0, %v1414
      %v1416 = vld [vmem:[%s9] sm:$0xf]
      %v1417 = vld [vmem:[%s9 + $0x4] sm:$0xf]
      %v1418 = vld [vmem:[%s9 + $0x8] sm:$0xf]
      %v1419 = vld [vmem:[%s9 + $0xc] sm:$0xf]
      %v1420 = vld [vmem:[%s9 + $0x10] sm:$0xf]
      %v1421 = vld [vmem:[%s9 + $0x14] sm:$0xf]
      %v1422 = vld [vmem:[%s9 + $0x18] sm:$0xf]
      %v1423 = vld [vmem:[%s9 + $0x1c] sm:$0xf]
      %v1424 = vld [vmem:[%s9 + $0x20] sm:$0xf]
      %v1425 = vld [vmem:[%s9 + $0x24] sm:$0xf]
      %v1426 = vld [vmem:[%s9 + $0x28] sm:$0xf]
      %v1427 = vld [vmem:[%s9 + $0x2c] sm:$0xf]
      %v1428 = vld [vmem:[%s9 + $0x30] sm:$0xf]
      %v1429 = vld [vmem:[%s9 + $0x34] sm:$0xf]
      %v1430 = vld [vmem:[%s9 + $0x38] sm:$0xf]
      %v1431 = vld [vmem:[%s9 + $0x3c] sm:$0xf]
      %v1432 = vld [vmem:[%s10] sm:$0x1]
      %v1434 = vlaneseq
      %v1435 = vshrl.u32 %v1434, 7
      %v1436 = vsub.s32 0, %v1435
      %v1437 = vrot.slane %v1432, %v1436
      %v1439 = vpack.c.b16 %v393, %v392
      %v1457 = vunpack.c.l.b16 %v1416
      %v1458 = vunpack.c.l.b16 %v1417
      %v1459 = vunpack.c.l.b16 %v1418
      %v1460 = vunpack.c.l.b16 %v1419
      %v1461 = vunpack.c.l.b16 %v1420
      %v1462 = vunpack.c.l.b16 %v1421
      %v1463 = vunpack.c.l.b16 %v1422
      %v1464 = vunpack.c.l.b16 %v1423
      %v1465 = vunpack.c.l.b16 %v1424
      %v1466 = vunpack.c.l.b16 %v1425
      %v1467 = vunpack.c.l.b16 %v1426
      %v1468 = vunpack.c.l.b16 %v1427
      %v1469 = vunpack.c.l.b16 %v1428
      %v1470 = vunpack.c.l.b16 %v1429
      %v1471 = vunpack.c.l.b16 %v1430
      %v1472 = vunpack.c.l.b16 %v1431
      %v1473 = vpack.c.b16 %v1458, %v1457
      %v1474 = vpack.c.b16 %v1460, %v1459
      %v1475 = vpack.c.b16 %v1462, %v1461
      %v1476 = vpack.c.b16 %v1464, %v1463
      %v1477 = vpack.c.b16 %v1466, %v1465
      %v1478 = vpack.c.b16 %v1468, %v1467
      %v1479 = vpack.c.b16 %v1470, %v1469
      %v1480 = vpack.c.b16 %v1472, %v1471
      %1489 = vmatprep.subr.bf16.mxu0 0
      %1490 = vmatpush1.bf16.msra.mxu0 %v1473
      %1491 = vmatprep.subr.bf16.mxu0 0
      %1492 = vmatpush1.bf16.msra.mxu0 %v1474
      %1493 = vmatprep.subr.bf16.mxu0 0
      %1494 = vmatpush1.bf16.msra.mxu0 %v1475
      %1495 = vmatprep.subr.bf16.mxu0 0
      %1496 = vmatpush1.bf16.msra.mxu0 %v1476
      %1497 = vmatprep.subr.bf16.mxu0 0
      %1498 = vmatpush1.bf16.msra.mxu0 %v1477
      %1499 = vmatprep.subr.bf16.mxu0 0
      %1500 = vmatpush1.bf16.msra.mxu0 %v1478
      %1501 = vmatprep.subr.bf16.mxu0 0
      %1502 = vmatpush1.bf16.msra.mxu0 %v1479
      %1503 = vmatprep.subr.bf16.mxu0 0
      %1504 = vmatpush1.bf16.msra.mxu0 %v1480
      %1505 = vmatprep.subr.bf16.mxu0 0
      %1506 = vmatpush1.bf16.msra.mxu0 0
      %1507 = vmatprep.subr.bf16.mxu0 0
      %1508 = vmatpush1.bf16.msra.mxu0 0
      %1509 = vmatprep.subr.bf16.mxu0 0
      %1510 = vmatpush1.bf16.msra.mxu0 0
      %1511 = vmatprep.subr.bf16.mxu0 0
      %1512 = vmatpush1.bf16.msra.mxu0 0
      %1513 = vmatprep.subr.bf16.mxu0 0
      %1514 = vmatpush1.bf16.msra.mxu0 0
      %1515 = vmatprep.subr.bf16.mxu0 0
      %1516 = vmatpush1.bf16.msra.mxu0 0
      %1517 = vmatprep.subr.bf16.mxu0 0
      %1518 = vmatpush1.bf16.msra.mxu0 0
      %1519 = vmatprep.subr.bf16.mxu0 0
      %1520 = vmatpush1.bf16.msra.mxu0 0
      %1521 = vmatprep.mubr.bf16.mxu0 0
      %1522 = vmatmul.mubr.bf16.gmra.mrb[0].mxu0 %v1439
      %v1523 = vpop.f32.mrb[0].mxu0
      %v1524 = vadd.f32 %v1437, %v1523
      %v1525 = vpop.f32.mrb[0].mxu0
      %v1526 = vpop.f32.mrb[0].mxu0
      %v1527 = vadd.f32 %v1437, %v1526
      %v1528 = vpop.f32.mrb[0].mxu0
      %1529 = vdwg.mxu0
      %v1530 = vlaneseq
      %v1531 = vshrl.u32 %v1530, 7
      %v1532 = vsub.s32 0, %v1531
      %v1533 = vrot.slane %v1415, %v1532
      %v1534 = vmul.f32 %v1181, %v1533
      %v1535 = vmul.f32 %v1182, %v1533
      %v1536 = vadd.f32 %v1534, %v1524
      %v1537 = vadd.f32 %v1535, %v1527
      %1538 = vst [vmem:[%s386] sm:$0xff] %v1536
      %1539 = vst [vmem:[%s386 + $0x8] sm:$0xff] %v1537
      %p1540 = scmp.lt.s32.totalorder %s22, 1
      %s1541 = scalar_select %p1540, %s22, 1
      %s1542 = smul.addr %s1541, 2
      %s1543 = smul.addr %s1542, 8
      %s1544 = scalar_lea.vmem %s11, %s1543
      // Predicated region
      $region65: #{resnet_block_forward.1} parent=63 // pred_check
        %p1545 = pneg %p276
      $region66: #{resnet_block_forward.1} parent=63 // pred_check_branch
        %1547 = sbr.rel (%p1545) target = $region68
      $region67: #{resnet_block_forward.1} parent=63 // pred_region
        _
      $region68: #{resnet_block_forward.1} parent=63 // pred_fallthru
        _
    $region64: #{resnet_block_forward.1} parent=5 // pred_fallthru
      _
    %p1548 = scmp.le.s32.totalorder 2, %s17
    // Predicated region
    $region69: #{resnet_block_forward.1} parent=5 // pred_check
      %p1549 = pneg %p1548
    $region70: #{resnet_block_forward.1} parent=5 // pred_check_branch
      %1551 = sbr.rel (%p1549) target = $region72
    $region71: #{resnet_block_forward.1} parent=5 // pred_region
      %s1552 = ssub.s32 %s17, 2
      // Predicated region
      $region73: #{resnet_block_forward.1} parent=71 // pred_check
        %p1553 = pneg %p282
      $region74: #{resnet_block_forward.1} parent=71 // pred_check_branch
        %1555 = sbr.rel (%p1553) target = $region76
      $region75: #{resnet_block_forward.1} parent=71 // pred_region
        %p1556 = scmp.lt.s32.totalorder %s23, 1
        %s1557 = scalar_select %p1556, %s23, 1
        %s1558 = smul.addr %s1557, 2
        %s1559 = smul.addr %s1558, 8
        %s1560 = scalar_lea.vmem %s11, %s1559
      $region76: #{resnet_block_forward.1} parent=71 // pred_fallthru
        _
    $region72: #{resnet_block_forward.1} parent=5 // pred_fallthru
      _
  $region6: #{resnet_block_forward.1} parent=0 // loop_footer
    %s21 = sadd.s32 1, %s17
  $region7: #{resnet_block_forward.1} parent=0 // loop_footer_branch
    %16 = sbr.rel target = $region3
  $region8: #{resnet_block_forward.1} parent=0 // loop_exit
    _

</llo_original>
